<compile_context>
chip_gen: v7x
topology: tpu7x:2x2x1
jax: 0.10.0
libtpu: 0.0.40
codegen_flags: <defaults>
</compile_context>

<pallas_src>
import functools

import jax
import jax.numpy as jnp
from jax.experimental import pallas as pl
from jax.experimental.pallas import tpu as pltpu


# ----------------------------------------------------------------------------
# helpers
# ----------------------------------------------------------------------------
def _round_up(x, m):
    return ((x + m - 1) // m) * m


def _pad2(a, rows, cols):
    return jnp.pad(a, ((0, rows - a.shape[0]), (0, cols - a.shape[1])))


def _vmem_limit_bytes(payload_bytes):
    """Scoped VMEM limit derived from the estimated resident footprint.

    payload_bytes should already include double buffers; we add compiler
    scratch headroom and keep a conservative floor (never above v7x's 64 MiB
    physical VMEM at the sizes used here).
    """
    return int(max(payload_bytes + (4 << 20), 16 << 20))


def _pick_node_tile(n_pad):
    """MXU/lane-friendly row tile; prefer >= 2 tiles so the 'parallel' grid
    axis can shard across v7x's two TensorCores."""
    for t in (512, 256, 128):
        if n_pad % t == 0 and n_pad // t >= 2:
            return t
    return 128


# ----------------------------------------------------------------------------
# path 1: whole forward fused into a single VMEM-resident kernel (small N)
# ----------------------------------------------------------------------------
def _gcn_fused_kernel(a_ref, dis_ref, xs_ref, w1_ref, b1_ref, w2_ref, b2_ref,
                      w3_ref, b3_ref, pool_ref, wl_ref, bl_ref, o_ref):
    f32 = jnp.float32
    bf16 = jnp.bfloat16
    a = a_ref[...]        # structural (A + I), exact 0/1 values in bf16
    dis = dis_ref[...]    # D^{-1/2} column vector, f32, zero on padded rows

    def conv(h_scaled, w_ref, b_ref, relu, prescale_out):
        # (A + I) @ (D^{-1/2} H)   -- f32 accumulation on the MXU
        z = jnp.dot(a, h_scaled, preferred_element_type=f32)
        m = (dis * z).astype(bf16)                      # = A_norm @ H
        r = jnp.dot(m, w_ref[...], preferred_element_type=f32) + b_ref[...]
        if relu:
            r = jnp.maximum(r, 0.0)
        if prescale_out:
            r = dis * r          # pre-scale rows for the next conv's A matmul
        return r.astype(bf16)

    h1 = conv(xs_ref[...], w1_ref, b1_ref, relu=True, prescale_out=True)
    h2 = conv(h1, w2_ref, b2_ref, relu=True, prescale_out=True)
    h3 = conv(h2, w3_ref, b3_ref, relu=False, prescale_out=False)

    # global_add_pool + dropout(p=0.5, training=False)==identity + Linear
    pooled = jnp.dot(pool_ref[...], h3, preferred_element_type=f32)
    logits = jnp.dot(pooled.astype(bf16), wl_ref[...],
                     preferred_element_type=f32)
    o_ref[...] = logits + bl_ref[...]


def _gcn_fused(a_p, dis_p, xs_p, w1_p, b1_p, w2_p, b2_p, w3_p, b3_p,
               pool_p, wl_p, bl_p):
    operands = (a_p, dis_p, xs_p, w1_p, b1_p, w2_p, b2_p, w3_p, b3_p,
                pool_p, wl_p, bl_p)
    n_pad = a_p.shape[0]
    f_pad = xs_p.shape[1]
    h_pad = w1_p.shape[1]
    g_pad = pool_p.shape[0]
    c_pad = wl_p.shape[1]

    # resident operands (no pipelining: single invocation) + f32 temporaries
    payload = sum(int(op.size) * op.dtype.itemsize for op in operands)
    payload += 6 * n_pad * max(f_pad, h_pad) * 4

    return pl.pallas_call(
        _gcn_fused_kernel,
        out_shape=jax.ShapeDtypeStruct((g_pad, c_pad), jnp.float32),
        in_specs=[pl.BlockSpec(op.shape, lambda *_: (0, 0)) for op in operands],
        out_specs=pl.BlockSpec((g_pad, c_pad), lambda *_: (0, 0)),
        compiler_params=pltpu.CompilerParams(
            vmem_limit_bytes=_vmem_limit_bytes(payload)),
    )(*operands)


# ----------------------------------------------------------------------------
# path 2 (large N): fused GCNConv kernel, tiled over (row tiles, k tiles)
# ----------------------------------------------------------------------------
def _fused_conv_kernel(a_ref, hin_ref, dis_ref, w_ref, b_ref, o_ref, acc_ref,
                       *, relu, prescale_out, tk):
    """One (row-tile i, k-tile kk) grid step of a whole GCNConv layer.

    a_ref  : [TM, TK]      bf16  structural (A+I) tile
    hin_ref: [N_pad, Hin]  bf16  resident pre-scaled input slab (DMA'd once)
    dis_ref: [TM, 1]       f32   D^{-1/2} rows of this row tile
    w_ref  : [Hin, Hout]   bf16  layer weight (resident)
    b_ref  : [1, Hout]     f32   layer bias
    o_ref  : [TM, Hout]    bf16  layer output row tile
    acc_ref: [TM, Hin]     f32   VMEM accumulator across the k axis
    """
    kk = pl.program_id(1)

    @pl.when(kk == 0)
    def _init():
        acc_ref[...] = jnp.zeros_like(acc_ref)

    k0 = pl.multiple_of(kk * tk, tk)
    acc_ref[...] += jnp.dot(a_ref[...], hin_ref[pl.ds(k0, tk), :],
                            preferred_element_type=jnp.float32)

    @pl.when(kk == pl.num_programs(1) - 1)
    def _finalize():
        dis = dis_ref[...]
        m = (dis * acc_ref[...]).astype(jnp.bfloat16)   # A_norm @ H (row tile)
        r = jnp.dot(m, w_ref[...], preferred_element_type=jnp.float32)
        r = r + b_ref[...]
        if relu:
            r = jnp.maximum(r, 0.0)
        if prescale_out:
            r = dis * r
        o_ref[...] = r.astype(o_ref.dtype)


def _fused_conv(a_p, hin_scaled, dis_p, w_p, b_p, *, relu, prescale_out,
                tm, tk):
    n_pad = a_p.shape[0]
    h_in = hin_scaled.shape[1]
    h_out = w_p.shape[1]
    grid = (n_pad // tm, n_pad // tk)
    kernel = functools.partial(_fused_conv_kernel, relu=relu,
                               prescale_out=prescale_out, tk=tk)

    # double-buffered blocks + scratch accumulator
    payload = 2 * (tm * tk * 2 + n_pad * h_in * 2 + tm * 4
                   + h_in * h_out * 2 + h_out * 4 + tm * h_out * 2)
    payload += tm * h_in * 4

    return pl.pallas_call(
        kernel,
        out_shape=jax.ShapeDtypeStruct((n_pad, h_out), jnp.bfloat16),
        grid=grid,
        in_specs=[
            pl.BlockSpec((tm, tk), lambda i, kk: (i, kk)),
            pl.BlockSpec((n_pad, h_in), lambda i, kk: (0, 0)),   # resident slab
            pl.BlockSpec((tm, 1), lambda i, kk: (i, 0)),
            pl.BlockSpec((h_in, h_out), lambda i, kk: (0, 0)),
            pl.BlockSpec((1, h_out), lambda i, kk: (0, 0)),
        ],
        out_specs=pl.BlockSpec((tm, h_out), lambda i, kk: (i, 0)),
        scratch_shapes=[pltpu.VMEM((tm, h_in), jnp.float32)],
        compiler_params=pltpu.CompilerParams(
            dimension_semantics=("parallel", "arbitrary"),
            vmem_limit_bytes=_vmem_limit_bytes(payload)),
    )(a_p, hin_scaled, dis_p, w_p, b_p)


# ----------------------------------------------------------------------------
# path 2: global_add_pool (tiled over node rows) + fused final Linear
# ----------------------------------------------------------------------------
def _pool_linear_kernel(p_ref, h_ref, wl_ref, bl_ref, o_ref, pooled_ref):
    i = pl.program_id(0)

    @pl.when(i == 0)
    def _init():
        pooled_ref[...] = jnp.zeros_like(pooled_ref)

    pooled_ref[...] += jnp.dot(p_ref[...], h_ref[...],
                               preferred_element_type=jnp.float32)

    @pl.when(i == pl.num_programs(0) - 1)
    def _finalize():
        # dropout(p=0.5, training=False) -> identity
        logits = jnp.dot(pooled_ref[...].astype(jnp.bfloat16), wl_ref[...],
                         preferred_element_type=jnp.float32)
        o_ref[...] = logits + bl_ref[...]


def _pool_linear(pool_p, h, wl_p, bl_p, *, tm):
    g_pad, n_pad = pool_p.shape
    h_pad = h.shape[1]
    c_pad = wl_p.shape[1]
    grid = (n_pad // tm,)

    payload = 2 * (g_pad * tm * 2 + tm * h_pad * 2 + h_pad * c_pad * 2
                   + c_pad * 4 + g_pad * c_pad * 4)
    payload += g_pad * h_pad * 4

    return pl.pallas_call(
        _pool_linear_kernel,
        out_shape=jax.ShapeDtypeStruct((g_pad, c_pad), jnp.float32),
        grid=grid,
        in_specs=[
            pl.BlockSpec((g_pad, tm), lambda i: (0, i)),
            pl.BlockSpec((tm, h_pad), lambda i: (i, 0)),
            pl.BlockSpec((h_pad, c_pad), lambda i: (0, 0)),
            pl.BlockSpec((1, c_pad), lambda i: (0, 0)),
        ],
        out_specs=pl.BlockSpec((g_pad, c_pad), lambda i: (0, 0)),
        scratch_shapes=[pltpu.VMEM((g_pad, h_pad), jnp.float32)],
        compiler_params=pltpu.CompilerParams(
            dimension_semantics=("arbitrary",),
            vmem_limit_bytes=_vmem_limit_bytes(payload)),
    )(pool_p, h, wl_p, bl_p)


# ----------------------------------------------------------------------------
# forward pass
# ----------------------------------------------------------------------------
@functools.partial(jax.jit, static_argnames=("num_graphs", "force_tiled"))
def gcn_forward(x, edge_index, batch, params, *, num_graphs, force_tiled=False):
    n, f = x.shape
    (w1, b1, w2, b2, w3, b3, wl, bl) = params
    hidden = w1.shape[1]
    num_classes = wl.shape[1]
    bf16 = jnp.bfloat16

    # ---- structural adjacency (A + I) built directly in bf16 (0/1 exact);
    #      D^{-1/2} kept in exact f32 and folded into rows/accumulator -------
    src, dst = edge_index[0], edge_index[1]
    a = jnp.zeros((n, n), bf16).at[dst, src].add(jnp.ones(src.shape, bf16))
    a = a + jnp.eye(n, dtype=bf16)
    deg = jnp.ones((n,), jnp.float32).at[dst].add(1.0)      # row sums of A+I
    dis = jax.lax.rsqrt(deg)
    # TODO(synk): for a fixed graph batch, cache `a` / `dis` across forward
    # calls instead of rebuilding them every time.

    # ---- pad to MXU/lane friendly sizes (zero padding is exact) ------------
    n_pad = _round_up(n, 128)
    f_pad = _round_up(f, 128)
    h_pad = _round_up(hidden, 128)
    c_pad = _round_up(num_classes, 128)
    g_pad = _round_up(num_graphs, 8)

    a_p = _pad2(a, n_pad, n_pad)
    dis_p = jnp.pad(dis, (0, n_pad - n))[:, None]            # f32 [n_pad, 1]
    xs = x.astype(jnp.float32) * dis[:, None]                # D^{-1/2} X (f32)
    xs_p = _pad2(xs, n_pad, f_pad).astype(bf16)

    w1_p = _pad2(w1, f_pad, h_pad).astype(bf16)
    w2_p = _pad2(w2, h_pad, h_pad).astype(bf16)
    w3_p = _pad2(w3, h_pad, h_pad).astype(bf16)
    b1_p = _pad2(b1, 1, h_pad).astype(jnp.float32)
    b2_p = _pad2(b2, 1, h_pad).astype(jnp.float32)
    b3_p = _pad2(b3, 1, h_pad).astype(jnp.float32)
    wl_p = _pad2(wl, h_pad, c_pad).astype(bf16)
    bl_p = _pad2(bl, 1, c_pad).astype(jnp.float32)

    pool = (batch[None, :] == jnp.arange(num_graphs)[:, None]).astype(bf16)
    pool_p = _pad2(pool, g_pad, n_pad)

    use_fused = (not force_tiled) and n_pad <= 1024
    if use_fused:
        # single VMEM-resident kernel: no intermediate HBM traffic, 1 launch
        out_p = _gcn_fused(a_p, dis_p, xs_p, w1_p, b1_p, w2_p, b2_p, w3_p,
                           b3_p, pool_p, wl_p, bl_p)
    else:
        tm = _pick_node_tile(n_pad)
        tk = tm
        conv = functools.partial(_fused_conv, tm=tm, tk=tk)
        # conv1/conv2 emit D^{-1/2}-pre-scaled outputs (padded rows exactly 0)
        h1s = conv(a_p, xs_p, dis_p, w1_p, b1_p, relu=True, prescale_out=True)
        h2s = conv(a_p, h1s, dis_p, w2_p, b2_p, relu=True, prescale_out=True)
        h3 = conv(a_p, h2s, dis_p, w3_p, b3_p, relu=False, prescale_out=False)
        out_p = _pool_linear(pool_p, h3, wl_p, bl_p, tm=tm)

    return out_p[:num_graphs, :num_classes]


# ----------------------------------------------------------------------------
# parameters / reference / demo
# ----------------------------------------------------------------------------
def init_params(key, num_features, hidden, num_classes):
    """Deterministic synthetic parameters (glorot-ish), shapes match the module."""
    ks = jax.random.split(key, 4)

    def glorot(k, fan_in, fan_out):
        scale = jnp.sqrt(6.0 / (fan_in + fan_out))
        return jax.random.uniform(k, (fan_in, fan_out), jnp.float32, -scale, scale)

    w1 = glorot(ks[0], num_features, hidden)
    w2 = glorot(ks[1], hidden, hidden)
    w3 = glorot(ks[2], hidden, hidden)
    wl = glorot(ks[3], hidden, num_classes)      # stored [H, C] = Linear.weight.T
    b1 = jnp.zeros((1, hidden), jnp.float32)
    b2 = jnp.zeros((1, hidden), jnp.float32)
    b3 = jnp.zeros((1, hidden), jnp.float32)
    bl = jnp.full((1, num_classes), 0.01, jnp.float32)
    return (w1, b1, w2, b2, w3, b3, wl, bl)


def gcn_reference(x, edge_index, batch, params, num_graphs):
    """Pure-JAX f32 reference of the same forward pass (for validation)."""
    n = x.shape[0]
    src, dst = edge_index[0], edge_index[1]
    adj = jnp.zeros((n, n), jnp.float32).at[dst, src].add(1.0)
    adj = adj + jnp.eye(n, dtype=jnp.float32)
    deg = jnp.sum(adj, axis=1)
    dis = jax.lax.rsqrt(deg)
    a = dis[:, None] * adj * dis[None, :]
    (w1, b1, w2, b2, w3, b3, wl, bl) = params
    h = jnp.maximum(a @ (x @ w1) + b1, 0.0)
    h = jnp.maximum(a @ (h @ w2) + b2, 0.0)
    h = a @ (h @ w3) + b3
    pool = (batch[None, :] == jnp.arange(num_graphs)[:, None]).astype(jnp.float32)
    return (pool @ h) @ wl + bl


if __name__ == "__main__":
    key = jax.random.PRNGKey(0)
    k_x1, k_x2, k_p = jax.random.split(key, 3)

    num_features, hidden, num_classes = 16, 32, 8
    params = init_params(k_p, num_features, hidden, num_classes)

    def build_ring_batch(num_graphs, nodes_per_graph):
        batch = jnp.repeat(jnp.arange(num_graphs, dtype=jnp.int32),
                           nodes_per_graph)
        srcs, dsts = [], []
        for g in range(num_graphs):
            base = g * nodes_per_graph
            for i in range(nodes_per_graph):
                u = base + i
                v = base + (i + 1) % nodes_per_graph
                srcs += [u, v]
                dsts += [v, u]
        return batch, jnp.array([srcs, dsts], dtype=jnp.int32)

    def check(x, edge_index, batch, num_graphs, force_tiled, tol):
        out = gcn_forward(x, edge_index, batch, params,
                          num_graphs=num_graphs, force_tiled=force_tiled)
        out = jax.block_until_ready(out)
        assert out.shape == (num_graphs, num_classes)
        assert bool(jnp.all(jnp.isfinite(out)))
        ref = gcn_reference(x, edge_index, batch, params, num_graphs)
        err = float(jnp.max(jnp.abs(out - ref)))
        scale = float(jnp.max(jnp.abs(ref))) + 1e-6
        assert err / scale < tol, f"mismatch vs reference: rel err {err / scale:.4f}"

    # --- small batch (32 nodes): single fully-fused VMEM-resident kernel ----
    ng1, npg1 = 4, 8
    batch1, ei1 = build_ring_batch(ng1, npg1)
    x1 = jax.random.normal(k_x1, (ng1 * npg1, num_features), jnp.float32)
    check(x1, ei1, batch1, ng1, force_tiled=False, tol=0.08)

    # --- larger batch (600 nodes): tiled/pipelined fused-conv path ----------
    ng2, npg2 = 6, 100
    batch2, ei2 = build_ring_batch(ng2, npg2)
    x2 = jax.random.normal(k_x2, (ng2 * npg2, num_features), jnp.float32)
    check(x2, ei2, batch2, ng2, force_tiled=True, tol=0.08)

    print("KERNEL_OK")
</pallas_src>

<mosaic_0001>
module attributes {stable_mosaic.version = 11 : i64} {
  func.func private @main(%arg0: i32) attributes {dimension_semantics = [#tpu.dimension_semantics<core_parallel>], iteration_bounds = array<i64: 2>, tpu.core_type = #tpu.core_type<sc_scalar_subcore>, window_params = []} {
    return
  }
}

module attributes {stable_mosaic.version = 11 : i64} {
  func.func private @main(%arg0: i32) attributes {dimension_semantics = [#tpu.dimension_semantics<core_parallel>], iteration_bounds = array<i64: 2>, tpu.core_type = #tpu.core_type<sc_scalar_subcore>, window_params = []} {
    return
  }
}

module attributes {stable_mosaic.version = 11 : i64} {
  func.func @_gcn_fused_kernel(%arg0: memref<128x128xbf16, #tpu.memory_space<vmem>>, %arg1: memref<128x1xf32, #tpu.memory_space<vmem>>, %arg2: memref<128x128xbf16, #tpu.memory_space<vmem>>, %arg3: memref<128x128xbf16, #tpu.memory_space<vmem>>, %arg4: memref<1x128xf32, #tpu.memory_space<vmem>>, %arg5: memref<128x128xbf16, #tpu.memory_space<vmem>>, %arg6: memref<1x128xf32, #tpu.memory_space<vmem>>, %arg7: memref<128x128xbf16, #tpu.memory_space<vmem>>, %arg8: memref<1x128xf32, #tpu.memory_space<vmem>>, %arg9: memref<8x128xbf16, #tpu.memory_space<vmem>>, %arg10: memref<128x128xbf16, #tpu.memory_space<vmem>>, %arg11: memref<1x128xf32, #tpu.memory_space<vmem>>, %arg12: memref<8x128xf32, #tpu.memory_space<vmem>>) attributes {dimension_semantics = [], scalar_prefetch = 0 : i64, scratch_operands = 0 : i64, tpu.core_type = #tpu.core_type<tc>} {
    %c0 = arith.constant 0 : index
    %c0_0 = arith.constant 0 : index
    %0 = vector.load %arg0[%c0, %c0_0] : memref<128x128xbf16, #tpu.memory_space<vmem>>, vector<128x128xbf16>
    %c0_1 = arith.constant 0 : index
    %c0_2 = arith.constant 0 : index
    %1 = vector.load %arg1[%c0_1, %c0_2] : memref<128x1xf32, #tpu.memory_space<vmem>>, vector<128x1xf32>
    %c0_3 = arith.constant 0 : index
    %c0_4 = arith.constant 0 : index
    %2 = vector.load %arg2[%c0_3, %c0_4] : memref<128x128xbf16, #tpu.memory_space<vmem>>, vector<128x128xbf16>
    %cst = arith.constant dense<0.000000e+00> : vector<128x128xf32>
    %3 = tpu.matmul %0, %2, %cst {dimension_numbers = #tpu.dot_dimension_numbers<[1], [0], [0], [1], [0, 0, 1, 1], [], []>} : vector<128x128xbf16>, vector<128x128xbf16>, vector<128x128xf32> -> vector<128x128xf32>
    %4 = vector.broadcast %1 : vector<128x1xf32> to vector<128x128xf32>
    %5 = arith.mulf %4, %3 : vector<128x128xf32>
    %6 = arith.truncf %5 : vector<128x128xf32> to vector<128x128xbf16>
    %c0_5 = arith.constant 0 : index
    %c0_6 = arith.constant 0 : index
    %7 = vector.load %arg3[%c0_5, %c0_6] : memref<128x128xbf16, #tpu.memory_space<vmem>>, vector<128x128xbf16>
    %cst_7 = arith.constant dense<0.000000e+00> : vector<128x128xf32>
    %8 = tpu.matmul %6, %7, %cst_7 {dimension_numbers = #tpu.dot_dimension_numbers<[1], [0], [0], [1], [0, 0, 1, 1], [], []>} : vector<128x128xbf16>, vector<128x128xbf16>, vector<128x128xf32> -> vector<128x128xf32>
    %c0_8 = arith.constant 0 : index
    %c0_9 = arith.constant 0 : index
    %9 = vector.load %arg4[%c0_8, %c0_9] : memref<1x128xf32, #tpu.memory_space<vmem>>, vector<1x128xf32>
    %10 = vector.broadcast %9 : vector<1x128xf32> to vector<128x128xf32>
    %11 = arith.addf %8, %10 : vector<128x128xf32>
    %cst_10 = arith.constant 0.000000e+00 : f32
    %12 = vector.broadcast %cst_10 : f32 to vector<128x128xf32>
    %13 = arith.maximumf %11, %12 : vector<128x128xf32>
    %14 = vector.broadcast %1 : vector<128x1xf32> to vector<128x128xf32>
    %15 = arith.mulf %14, %13 : vector<128x128xf32>
    %16 = arith.truncf %15 : vector<128x128xf32> to vector<128x128xbf16>
    %cst_11 = arith.constant dense<0.000000e+00> : vector<128x128xf32>
    %17 = tpu.matmul %0, %16, %cst_11 {dimension_numbers = #tpu.dot_dimension_numbers<[1], [0], [0], [1], [0, 0, 1, 1], [], []>} : vector<128x128xbf16>, vector<128x128xbf16>, vector<128x128xf32> -> vector<128x128xf32>
    %18 = vector.broadcast %1 : vector<128x1xf32> to vector<128x128xf32>
    %19 = arith.mulf %18, %17 : vector<128x128xf32>
    %20 = arith.truncf %19 : vector<128x128xf32> to vector<128x128xbf16>
    %c0_12 = arith.constant 0 : index
    %c0_13 = arith.constant 0 : index
    %21 = vector.load %arg5[%c0_12, %c0_13] : memref<128x128xbf16, #tpu.memory_space<vmem>>, vector<128x128xbf16>
    %cst_14 = arith.constant dense<0.000000e+00> : vector<128x128xf32>
    %22 = tpu.matmul %20, %21, %cst_14 {dimension_numbers = #tpu.dot_dimension_numbers<[1], [0], [0], [1], [0, 0, 1, 1], [], []>} : vector<128x128xbf16>, vector<128x128xbf16>, vector<128x128xf32> -> vector<128x128xf32>
    %c0_15 = arith.constant 0 : index
    %c0_16 = arith.constant 0 : index
    %23 = vector.load %arg6[%c0_15, %c0_16] : memref<1x128xf32, #tpu.memory_space<vmem>>, vector<1x128xf32>
    %24 = vector.broadcast %23 : vector<1x128xf32> to vector<128x128xf32>
    %25 = arith.addf %22, %24 : vector<128x128xf32>
    %cst_17 = arith.constant 0.000000e+00 : f32
    %26 = vector.broadcast %cst_17 : f32 to vector<128x128xf32>
    %27 = arith.maximumf %25, %26 : vector<128x128xf32>
    %28 = vector.broadcast %1 : vector<128x1xf32> to vector<128x128xf32>
    %29 = arith.mulf %28, %27 : vector<128x128xf32>
    %30 = arith.truncf %29 : vector<128x128xf32> to vector<128x128xbf16>
    %cst_18 = arith.constant dense<0.000000e+00> : vector<128x128xf32>
    %31 = tpu.matmul %0, %30, %cst_18 {dimension_numbers = #tpu.dot_dimension_numbers<[1], [0], [0], [1], [0, 0, 1, 1], [], []>} : vector<128x128xbf16>, vector<128x128xbf16>, vector<128x128xf32> -> vector<128x128xf32>
    %32 = vector.broadcast %1 : vector<128x1xf32> to vector<128x128xf32>
    %33 = arith.mulf %32, %31 : vector<128x128xf32>
    %34 = arith.truncf %33 : vector<128x128xf32> to vector<128x128xbf16>
    %c0_19 = arith.constant 0 : index
    %c0_20 = arith.constant 0 : index
    %35 = vector.load %arg7[%c0_19, %c0_20] : memref<128x128xbf16, #tpu.memory_space<vmem>>, vector<128x128xbf16>
    %cst_21 = arith.constant dense<0.000000e+00> : vector<128x128xf32>
    %36 = tpu.matmul %34, %35, %cst_21 {dimension_numbers = #tpu.dot_dimension_numbers<[1], [0], [0], [1], [0, 0, 1, 1], [], []>} : vector<128x128xbf16>, vector<128x128xbf16>, vector<128x128xf32> -> vector<128x128xf32>
    %c0_22 = arith.constant 0 : index
    %c0_23 = arith.constant 0 : index
    %37 = vector.load %arg8[%c0_22, %c0_23] : memref<1x128xf32, #tpu.memory_space<vmem>>, vector<1x128xf32>
    %38 = vector.broadcast %37 : vector<1x128xf32> to vector<128x128xf32>
    %39 = arith.addf %36, %38 : vector<128x128xf32>
    %40 = arith.truncf %39 : vector<128x128xf32> to vector<128x128xbf16>
    %c0_24 = arith.constant 0 : index
    %c0_25 = arith.constant 0 : index
    %41 = vector.load %arg9[%c0_24, %c0_25] : memref<8x128xbf16, #tpu.memory_space<vmem>>, vector<8x128xbf16>
    %cst_26 = arith.constant dense<0.000000e+00> : vector<8x128xf32>
    %42 = tpu.matmul %41, %40, %cst_26 {dimension_numbers = #tpu.dot_dimension_numbers<[1], [0], [0], [1], [0, 0, 1, 1], [], []>} : vector<8x128xbf16>, vector<128x128xbf16>, vector<8x128xf32> -> vector<8x128xf32>
    %43 = arith.truncf %42 : vector<8x128xf32> to vector<8x128xbf16>
    %c0_27 = arith.constant 0 : index
    %c0_28 = arith.constant 0 : index
    %44 = vector.load %arg10[%c0_27, %c0_28] : memref<128x128xbf16, #tpu.memory_space<vmem>>, vector<128x128xbf16>
    %cst_29 = arith.constant dense<0.000000e+00> : vector<8x128xf32>
    %45 = tpu.matmul %43, %44, %cst_29 {dimension_numbers = #tpu.dot_dimension_numbers<[1], [0], [0], [1], [0, 0, 1, 1], [], []>} : vector<8x128xbf16>, vector<128x128xbf16>, vector<8x128xf32> -> vector<8x128xf32>
    %c0_30 = arith.constant 0 : index
    %c0_31 = arith.constant 0 : index
    %46 = vector.load %arg11[%c0_30, %c0_31] : memref<1x128xf32, #tpu.memory_space<vmem>>, vector<1x128xf32>
    %47 = vector.broadcast %46 : vector<1x128xf32> to vector<8x128xf32>
    %48 = arith.addf %45, %47 : vector<8x128xf32>
    %c0_32 = arith.constant 0 : index
    %c0_33 = arith.constant 0 : index
    %49 = vector.load %arg12[%c0_32, %c0_33] : memref<8x128xf32, #tpu.memory_space<vmem>>, vector<8x128xf32>
    tpu.vector_store %arg12[%c0_32, %c0_33], %48 {strides = array<i32>} : memref<8x128xf32, #tpu.memory_space<vmem>>, vector<8x128xf32>,
    return
  }
}

</mosaic_0001>

<llo_original>
// kernel: gcn_forward.1
$region0: #{gcn_forward.1}
  #allocation0 [shape = 'u32[]', space=smem, size = 0x4, offset = 0x4, fixed_abs, tag = 'smem constant byte address 0x4 - core index']
  #allocation1 [shape = 'u32[144,128]{1,0:T(1,128)}', space=vmem, size = 0x12000, scoped, tag = 'internal scratch']
  %s0 = inlined_call_operand.vmem [shape: bf16[128,128], index: 0, kind: input, shape index: {}]
  %s1 = inlined_call_operand.vmem [shape: f32[128,1], index: 1, kind: input, shape index: {}]
  %s2 = inlined_call_operand.vmem [shape: bf16[128,128], index: 2, kind: input, shape index: {}]
  %s3 = inlined_call_operand.vmem [shape: bf16[128,128], index: 3, kind: input, shape index: {}]
  %s4 = inlined_call_operand.vmem [shape: f32[1,128], index: 4, kind: input, shape index: {}]
  %s5 = inlined_call_operand.vmem [shape: bf16[128,128], index: 5, kind: input, shape index: {}]
  %s6 = inlined_call_operand.vmem [shape: f32[1,128], index: 6, kind: input, shape index: {}]
  %s7 = inlined_call_operand.vmem [shape: bf16[128,128], index: 7, kind: input, shape index: {}]
  %s8 = inlined_call_operand.vmem [shape: f32[1,128], index: 8, kind: input, shape index: {}]
  %s9 = inlined_call_operand.vmem [shape: bf16[8,128], index: 9, kind: input, shape index: {}]
  %s10 = inlined_call_operand.vmem [shape: bf16[128,128], index: 10, kind: input, shape index: {}]
  %s11 = inlined_call_operand.vmem [shape: f32[1,128], index: 11, kind: input, shape index: {}]
  %s12 = inlined_call_operand.vmem [shape: f32[8,128], index: 12, kind: output, shape index: {}]
  %s13 = sld [smem:[#allocation0]]
  $region58: #{gcn_forward.1} parent=0
    _
  %s15 = ssub.s32 1, %s13
  %s16 = scalar_select 0, %s15, %s13
  // Predicated region
  $region2: #{gcn_forward.1} parent=0 // pred_check
    _
  $region3: #{gcn_forward.1} parent=0 // pred_check_branch
    %18 = sbr.rel (0) target = $region5
  $region4: #{gcn_forward.1} parent=0 // pred_region
    _
  $region5: #{gcn_forward.1} parent=0 // pred_fallthru
    _
  // Predicated region
  $region6: #{gcn_forward.1} parent=0 // pred_check
    _
  $region7: #{gcn_forward.1} parent=0 // pred_check_branch
    %20 = sbr.rel (0) target = $region9
  $region8: #{gcn_forward.1} parent=0 // pred_region
    _
  $region9: #{gcn_forward.1} parent=0 // pred_fallthru
    _
  // Predicated region
  $region10: #{gcn_forward.1} parent=0 // pred_check
    _
  $region11: #{gcn_forward.1} parent=0 // pred_check_branch
    %22 = sbr.rel (0) target = $region13
  $region12: #{gcn_forward.1} parent=0 // pred_region
    _
  $region13: #{gcn_forward.1} parent=0 // pred_fallthru
    _
  // Predicated region
  $region14: #{gcn_forward.1} parent=0 // pred_check
    _
  $region15: #{gcn_forward.1} parent=0 // pred_check_branch
    %24 = sbr.rel (0) target = $region17
  $region16: #{gcn_forward.1} parent=0 // pred_region
    _
  $region17: #{gcn_forward.1} parent=0 // pred_fallthru
    _
  // Predicated region
  $region18: #{gcn_forward.1} parent=0 // pred_check
    _
  $region19: #{gcn_forward.1} parent=0 // pred_check_branch
    %26 = sbr.rel (0) target = $region21
  $region20: #{gcn_forward.1} parent=0 // pred_region
    _
  $region21: #{gcn_forward.1} parent=0 // pred_fallthru
    _
  // Predicated region
  $region22: #{gcn_forward.1} parent=0 // pred_check
    _
  $region23: #{gcn_forward.1} parent=0 // pred_check_branch
    %28 = sbr.rel (0) target = $region25
  $region24: #{gcn_forward.1} parent=0 // pred_region
    _
  $region25: #{gcn_forward.1} parent=0 // pred_fallthru
    _
  // Predicated region
  $region26: #{gcn_forward.1} parent=0 // pred_check
    _
  $region27: #{gcn_forward.1} parent=0 // pred_check_branch
    %30 = sbr.rel (0) target = $region29
  $region28: #{gcn_forward.1} parent=0 // pred_region
    _
  $region29: #{gcn_forward.1} parent=0 // pred_fallthru
    _
  // Predicated region
  $region30: #{gcn_forward.1} parent=0 // pred_check
    _
  $region31: #{gcn_forward.1} parent=0 // pred_check_branch
    %32 = sbr.rel (0) target = $region33
  $region32: #{gcn_forward.1} parent=0 // pred_region
    _
  $region33: #{gcn_forward.1} parent=0 // pred_fallthru
    _
  // Predicated region
  $region34: #{gcn_forward.1} parent=0 // pred_check
    _
  $region35: #{gcn_forward.1} parent=0 // pred_check_branch
    %34 = sbr.rel (0) target = $region37
  $region36: #{gcn_forward.1} parent=0 // pred_region
    _
  $region37: #{gcn_forward.1} parent=0 // pred_fallthru
    _
  // Predicated region
  $region38: #{gcn_forward.1} parent=0 // pred_check
    _
  $region39: #{gcn_forward.1} parent=0 // pred_check_branch
    %36 = sbr.rel (0) target = $region41
  $region40: #{gcn_forward.1} parent=0 // pred_region
    _
  $region41: #{gcn_forward.1} parent=0 // pred_fallthru
    _
  // Predicated region
  $region42: #{gcn_forward.1} parent=0 // pred_check
    _
  $region43: #{gcn_forward.1} parent=0 // pred_check_branch
    %38 = sbr.rel (0) target = $region45
  $region44: #{gcn_forward.1} parent=0 // pred_region
    _
  $region45: #{gcn_forward.1} parent=0 // pred_fallthru
    _
  // Predicated region
  $region46: #{gcn_forward.1} parent=0 // pred_check
    _
  $region47: #{gcn_forward.1} parent=0 // pred_check_branch
    %40 = sbr.rel (0) target = $region49
  $region48: #{gcn_forward.1} parent=0 // pred_region
    _
  $region49: #{gcn_forward.1} parent=0 // pred_fallthru
    _
  %v42 = vld [vmem:[%s0] sm:$0xf]
  %v43 = vld [vmem:[%s0 + $0x4] sm:$0xf]
  %v44 = vld [vmem:[%s0 + $0x8] sm:$0xf]
  %v45 = vld [vmem:[%s0 + $0xc] sm:$0xf]
  %v46 = vld [vmem:[%s0 + $0x10] sm:$0xf]
  %v47 = vld [vmem:[%s0 + $0x14] sm:$0xf]
  %v48 = vld [vmem:[%s0 + $0x18] sm:$0xf]
  %v49 = vld [vmem:[%s0 + $0x1c] sm:$0xf]
  %v50 = vld [vmem:[%s0 + $0x20] sm:$0xf]
  %v51 = vld [vmem:[%s0 + $0x24] sm:$0xf]
  %v52 = vld [vmem:[%s0 + $0x28] sm:$0xf]
  %v53 = vld [vmem:[%s0 + $0x2c] sm:$0xf]
  %v54 = vld [vmem:[%s0 + $0x30] sm:$0xf]
  %v55 = vld [vmem:[%s0 + $0x34] sm:$0xf]
  %v56 = vld [vmem:[%s0 + $0x38] sm:$0xf]
  %v57 = vld [vmem:[%s0 + $0x3c] sm:$0xf]
  %v58 = vld [vmem:[%s1] sm:$0xff]
  %v59 = vld [vmem:[%s1 + $0x8] sm:$0xff]
  %v60 = vld [vmem:[%s1 + $0x10] sm:$0xff]
  %v61 = vld [vmem:[%s1 + $0x18] sm:$0xff]
  %v62 = vld [vmem:[%s1 + $0x20] sm:$0xff]
  %v63 = vld [vmem:[%s1 + $0x28] sm:$0xff]
  %v64 = vld [vmem:[%s1 + $0x30] sm:$0xff]
  %v65 = vld [vmem:[%s1 + $0x38] sm:$0xff]
  %v66 = vld [vmem:[%s1 + $0x40] sm:$0xff]
  %v67 = vld [vmem:[%s1 + $0x48] sm:$0xff]
  %v68 = vld [vmem:[%s1 + $0x50] sm:$0xff]
  %v69 = vld [vmem:[%s1 + $0x58] sm:$0xff]
  %v70 = vld [vmem:[%s1 + $0x60] sm:$0xff]
  %v71 = vld [vmem:[%s1 + $0x68] sm:$0xff]
  %v72 = vld [vmem:[%s1 + $0x70] sm:$0xff]
  %v73 = vld [vmem:[%s1 + $0x78] sm:$0xff]
  %v74 = vld [vmem:[%s2] sm:$0xf]
  %v75 = vld [vmem:[%s2 + $0x4] sm:$0xf]
  %v76 = vld [vmem:[%s2 + $0x8] sm:$0xf]
  %v77 = vld [vmem:[%s2 + $0xc] sm:$0xf]
  %v78 = vld [vmem:[%s2 + $0x10] sm:$0xf]
  %v79 = vld [vmem:[%s2 + $0x14] sm:$0xf]
  %v80 = vld [vmem:[%s2 + $0x18] sm:$0xf]
  %v81 = vld [vmem:[%s2 + $0x1c] sm:$0xf]
  %v82 = vld [vmem:[%s2 + $0x20] sm:$0xf]
  %v83 = vld [vmem:[%s2 + $0x24] sm:$0xf]
  %v84 = vld [vmem:[%s2 + $0x28] sm:$0xf]
  %v85 = vld [vmem:[%s2 + $0x2c] sm:$0xf]
  %v86 = vld [vmem:[%s2 + $0x30] sm:$0xf]
  %v87 = vld [vmem:[%s2 + $0x34] sm:$0xf]
  %v88 = vld [vmem:[%s2 + $0x38] sm:$0xf]
  %v89 = vld [vmem:[%s2 + $0x3c] sm:$0xf]
  %v106 = vunpack.c.l.b16 %v42
  %v107 = vunpack.c.l.b16 %v43
  %v108 = vunpack.c.l.b16 %v44
  %v109 = vunpack.c.l.b16 %v45
  %v110 = vunpack.c.l.b16 %v46
  %v111 = vunpack.c.l.b16 %v47
  %v112 = vunpack.c.l.b16 %v48
  %v113 = vunpack.c.l.b16 %v49
  %v114 = vunpack.c.l.b16 %v50
  %v115 = vunpack.c.l.b16 %v51
  %v116 = vunpack.c.l.b16 %v52
  %v117 = vunpack.c.l.b16 %v53
  %v118 = vunpack.c.l.b16 %v54
  %v119 = vunpack.c.l.b16 %v55
  %v120 = vunpack.c.l.b16 %v56
  %v121 = vunpack.c.l.b16 %v57
  %v122 = vpack.c.b16 %v107, %v106
  %v123 = vpack.c.b16 %v109, %v108
  %v124 = vpack.c.b16 %v111, %v110
  %v125 = vpack.c.b16 %v113, %v112
  %v126 = vpack.c.b16 %v115, %v114
  %v127 = vpack.c.b16 %v117, %v116
  %v128 = vpack.c.b16 %v119, %v118
  %v129 = vpack.c.b16 %v121, %v120
  %v154 = vunpack.c.l.b16 %v74
  %v155 = vunpack.c.l.b16 %v75
  %v156 = vunpack.c.l.b16 %v76
  %v157 = vunpack.c.l.b16 %v77
  %v158 = vunpack.c.l.b16 %v78
  %v159 = vunpack.c.l.b16 %v79
  %v160 = vunpack.c.l.b16 %v80
  %v161 = vunpack.c.l.b16 %v81
  %v162 = vunpack.c.l.b16 %v82
  %v163 = vunpack.c.l.b16 %v83
  %v164 = vunpack.c.l.b16 %v84
  %v165 = vunpack.c.l.b16 %v85
  %v166 = vunpack.c.l.b16 %v86
  %v167 = vunpack.c.l.b16 %v87
  %v168 = vunpack.c.l.b16 %v88
  %v169 = vunpack.c.l.b16 %v89
  %v170 = vpack.c.b16 %v155, %v154
  %v171 = vpack.c.b16 %v157, %v156
  %v172 = vpack.c.b16 %v159, %v158
  %v173 = vpack.c.b16 %v161, %v160
  %v174 = vpack.c.b16 %v163, %v162
  %v175 = vpack.c.b16 %v165, %v164
  %v176 = vpack.c.b16 %v167, %v166
  %v177 = vpack.c.b16 %v169, %v168
  %186 = vmatprep.subr.bf16.mxu0 0
  %187 = vmatpush1.bf16.msra.mxu0 %v170
  %188 = vmatprep.subr.bf16.mxu0 0
  %189 = vmatpush1.bf16.msra.mxu0 %v171
  %190 = vmatprep.subr.bf16.mxu0 0
  %191 = vmatpush1.bf16.msra.mxu0 %v172
  %192 = vmatprep.subr.bf16.mxu0 0
  %193 = vmatpush1.bf16.msra.mxu0 %v173
  %194 = vmatprep.subr.bf16.mxu0 0
  %195 = vmatpush1.bf16.msra.mxu0 %v174
  %196 = vmatprep.subr.bf16.mxu0 0
  %197 = vmatpush1.bf16.msra.mxu0 %v175
  %198 = vmatprep.subr.bf16.mxu0 0
  %199 = vmatpush1.bf16.msra.mxu0 %v176
  %200 = vmatprep.subr.bf16.mxu0 0
  %201 = vmatpush1.bf16.msra.mxu0 %v177
  %202 = vmatprep.subr.bf16.mxu0 0
  %203 = vmatpush1.bf16.msra.mxu0 0
  %204 = vmatprep.subr.bf16.mxu0 0
  %205 = vmatpush1.bf16.msra.mxu0 0
  %206 = vmatprep.subr.bf16.mxu0 0
  %207 = vmatpush1.bf16.msra.mxu0 0
  %208 = vmatprep.subr.bf16.mxu0 0
  %209 = vmatpush1.bf16.msra.mxu0 0
  %210 = vmatprep.subr.bf16.mxu0 0
  %211 = vmatpush1.bf16.msra.mxu0 0
  %212 = vmatprep.subr.bf16.mxu0 0
  %213 = vmatpush1.bf16.msra.mxu0 0
  %214 = vmatprep.subr.bf16.mxu0 0
  %215 = vmatpush1.bf16.msra.mxu0 0
  %216 = vmatprep.subr.bf16.mxu0 0
  %217 = vmatpush1.bf16.msra.mxu0 0
  %218 = vmatprep.mubr.bf16.mxu0 0
  %219 = vmatmul.mubr.bf16.gmra.mrb[0].mxu0 %v122
  %v220 = vpop.f32.mrb[0].mxu0
  %v221 = vadd.f32 0.0, %v220
  %v222 = vpop.f32.mrb[0].mxu0
  %v223 = vpop.f32.mrb[0].mxu0
  %v224 = vadd.f32 0.0, %v223
  %v225 = vpop.f32.mrb[0].mxu0
  %226 = vmatprep.mubr.bf16.mxu0 0
  %227 = vmatmul.mubr.bf16.gmra.mrb[0].mxu0 %v123
  %v228 = vpop.f32.mrb[0].mxu0
  %v229 = vadd.f32 0.0, %v228
  %v230 = vpop.f32.mrb[0].mxu0
  %v231 = vpop.f32.mrb[0].mxu0
  %v232 = vadd.f32 0.0, %v231
  %v233 = vpop.f32.mrb[0].mxu0
  %234 = vmatprep.mubr.bf16.mxu0 0
  %235 = vmatmul.mubr.bf16.gmra.mrb[0].mxu0 %v124
  %v236 = vpop.f32.mrb[0].mxu0
  %v237 = vadd.f32 0.0, %v236
  %v238 = vpop.f32.mrb[0].mxu0
  %v239 = vpop.f32.mrb[0].mxu0
  %v240 = vadd.f32 0.0, %v239
  %v241 = vpop.f32.mrb[0].mxu0
  %242 = vmatprep.mubr.bf16.mxu0 0
  %243 = vmatmul.mubr.bf16.gmra.mrb[0].mxu0 %v125
  %v244 = vpop.f32.mrb[0].mxu0
  %v245 = vadd.f32 0.0, %v244
  %v246 = vpop.f32.mrb[0].mxu0
  %v247 = vpop.f32.mrb[0].mxu0
  %v248 = vadd.f32 0.0, %v247
  %v249 = vpop.f32.mrb[0].mxu0
  %250 = vmatprep.mubr.bf16.mxu0 0
  %251 = vmatmul.mubr.bf16.gmra.mrb[0].mxu0 %v126
  %v252 = vpop.f32.mrb[0].mxu0
  %v253 = vadd.f32 0.0, %v252
  %v254 = vpop.f32.mrb[0].mxu0
  %v255 = vpop.f32.mrb[0].mxu0
  %v256 = vadd.f32 0.0, %v255
  %v257 = vpop.f32.mrb[0].mxu0
  %258 = vmatprep.mubr.bf16.mxu0 0
  %259 = vmatmul.mubr.bf16.gmra.mrb[0].mxu0 %v127
  %v260 = vpop.f32.mrb[0].mxu0
  %v261 = vadd.f32 0.0, %v260
  %v262 = vpop.f32.mrb[0].mxu0
  %v263 = vpop.f32.mrb[0].mxu0
  %v264 = vadd.f32 0.0, %v263
  %v265 = vpop.f32.mrb[0].mxu0
  %266 = vmatprep.mubr.bf16.mxu0 0
  %267 = vmatmul.mubr.bf16.gmra.mrb[0].mxu0 %v128
  %v268 = vpop.f32.mrb[0].mxu0
  %v269 = vadd.f32 0.0, %v268
  %v270 = vpop.f32.mrb[0].mxu0
  %v271 = vpop.f32.mrb[0].mxu0
  %v272 = vadd.f32 0.0, %v271
  %v273 = vpop.f32.mrb[0].mxu0
  %274 = vmatprep.mubr.bf16.mxu0 0
  %275 = vmatmul.mubr.bf16.gmra.mrb[0].mxu0 %v129
  %v276 = vpop.f32.mrb[0].mxu0
  %v277 = vadd.f32 0.0, %v276
  %v278 = vpop.f32.mrb[0].mxu0
  %v279 = vpop.f32.mrb[0].mxu0
  %v280 = vadd.f32 0.0, %v279
  %v281 = vpop.f32.mrb[0].mxu0
  %282 = vdwg.mxu0
  %284 = vset.pattern.permute.xlu0 0
  %285 = vperm.xlu0 %284, %v58
  %v286 = vpop.permute.xlu0 %285
  %289 = vset.pattern.permute.xlu0 0
  %290 = vperm.xlu0 %289, %v59
  %v291 = vpop.permute.xlu0 %290
  %294 = vset.pattern.permute.xlu0 0
  %295 = vperm.xlu0 %294, %v60
  %v296 = vpop.permute.xlu0 %295
  %299 = vset.pattern.permute.xlu0 0
  %300 = vperm.xlu0 %299, %v61
  %v301 = vpop.permute.xlu0 %300
  %304 = vset.pattern.permute.xlu0 0
  %305 = vperm.xlu0 %304, %v62
  %v306 = vpop.permute.xlu0 %305
  %309 = vset.pattern.permute.xlu0 0
  %310 = vperm.xlu0 %309, %v63
  %v311 = vpop.permute.xlu0 %310
  %314 = vset.pattern.permute.xlu0 0
  %315 = vperm.xlu0 %314, %v64
  %v316 = vpop.permute.xlu0 %315
  %319 = vset.pattern.permute.xlu0 0
  %320 = vperm.xlu0 %319, %v65
  %v321 = vpop.permute.xlu0 %320
  %324 = vset.pattern.permute.xlu0 0
  %325 = vperm.xlu0 %324, %v66
  %v326 = vpop.permute.xlu0 %325
  %329 = vset.pattern.permute.xlu0 0
  %330 = vperm.xlu0 %329, %v67
  %v331 = vpop.permute.xlu0 %330
  %334 = vset.pattern.permute.xlu0 0
  %335 = vperm.xlu0 %334, %v68
  %v336 = vpop.permute.xlu0 %335
  %339 = vset.pattern.permute.xlu0 0
  %340 = vperm.xlu0 %339, %v69
  %v341 = vpop.permute.xlu0 %340
  %344 = vset.pattern.permute.xlu0 0
  %345 = vperm.xlu0 %344, %v70
  %v346 = vpop.permute.xlu0 %345
  %349 = vset.pattern.permute.xlu0 0
  %350 = vperm.xlu0 %349, %v71
  %v351 = vpop.permute.xlu0 %350
  %354 = vset.pattern.permute.xlu0 0
  %355 = vperm.xlu0 %354, %v72
  %v356 = vpop.permute.xlu0 %355
  %359 = vset.pattern.permute.xlu0 0
  %360 = vperm.xlu0 %359, %v73
  %v361 = vpop.permute.xlu0 %360
  %v363 = vmul.f32 %v286, %v221
  %v364 = vmul.f32 %v291, %v224
  %v365 = vmul.f32 %v296, %v229
  %v366 = vmul.f32 %v301, %v232
  %v367 = vmul.f32 %v306, %v237
  %v368 = vmul.f32 %v311, %v240
  %v369 = vmul.f32 %v316, %v245
  %v370 = vmul.f32 %v321, %v248
  %v371 = vmul.f32 %v326, %v253
  %v372 = vmul.f32 %v331, %v256
  %v373 = vmul.f32 %v336, %v261
  %v374 = vmul.f32 %v341, %v264
  %v375 = vmul.f32 %v346, %v269
  %v376 = vmul.f32 %v351, %v272
  %v377 = vmul.f32 %v356, %v277
  %v378 = vmul.f32 %v361, %v280
  %v379 = vpack.c.bf16 %v364, %v363
  %v380 = vpack.c.bf16 %v366, %v365
  %v381 = vpack.c.bf16 %v368, %v367
  %v382 = vpack.c.bf16 %v370, %v369
  %v383 = vpack.c.bf16 %v372, %v371
  %v384 = vpack.c.bf16 %v374, %v373
  %v385 = vpack.c.bf16 %v376, %v375
  %v386 = vpack.c.bf16 %v378, %v377
  %v387 = vld [vmem:[%s3] sm:$0xf]
  %v388 = vld [vmem:[%s3 + $0x4] sm:$0xf]
  %v389 = vld [vmem:[%s3 + $0x8] sm:$0xf]
  %v390 = vld [vmem:[%s3 + $0xc] sm:$0xf]
  %v391 = vld [vmem:[%s3 + $0x10] sm:$0xf]
  %v392 = vld [vmem:[%s3 + $0x14] sm:$0xf]
  %v393 = vld [vmem:[%s3 + $0x18] sm:$0xf]
  %v394 = vld [vmem:[%s3 + $0x1c] sm:$0xf]
  %v395 = vld [vmem:[%s3 + $0x20] sm:$0xf]
  %v396 = vld [vmem:[%s3 + $0x24] sm:$0xf]
  %v397 = vld [vmem:[%s3 + $0x28] sm:$0xf]
  %v398 = vld [vmem:[%s3 + $0x2c] sm:$0xf]
  %v399 = vld [vmem:[%s3 + $0x30] sm:$0xf]
  %v400 = vld [vmem:[%s3 + $0x34] sm:$0xf]
  %v401 = vld [vmem:[%s3 + $0x38] sm:$0xf]
  %v402 = vld [vmem:[%s3 + $0x3c] sm:$0xf]
  %v403 = vld [vmem:[%s4] sm:$0x1]
  %v405 = vlaneseq
  %v406 = vshrl.u32 %v405, 7
  %v407 = vsub.s32 0, %v406
  %v408 = vrot.slane %v403, %v407
  %v426 = vunpack.c.l.b16 %v387
  %v427 = vunpack.c.l.b16 %v388
  %v428 = vunpack.c.l.b16 %v389
  %v429 = vunpack.c.l.b16 %v390
  %v430 = vunpack.c.l.b16 %v391
  %v431 = vunpack.c.l.b16 %v392
  %v432 = vunpack.c.l.b16 %v393
  %v433 = vunpack.c.l.b16 %v394
  %v434 = vunpack.c.l.b16 %v395
  %v435 = vunpack.c.l.b16 %v396
  %v436 = vunpack.c.l.b16 %v397
  %v437 = vunpack.c.l.b16 %v398
  %v438 = vunpack.c.l.b16 %v399
  %v439 = vunpack.c.l.b16 %v400
  %v440 = vunpack.c.l.b16 %v401
  %v441 = vunpack.c.l.b16 %v402
  %v442 = vpack.c.b16 %v427, %v426
  %v443 = vpack.c.b16 %v429, %v428
  %v444 = vpack.c.b16 %v431, %v430
  %v445 = vpack.c.b16 %v433, %v432
  %v446 = vpack.c.b16 %v435, %v434
  %v447 = vpack.c.b16 %v437, %v436
  %v448 = vpack.c.b16 %v439, %v438
  %v449 = vpack.c.b16 %v441, %v440
  %458 = vmatprep.subr.bf16.mxu0 0
  %459 = vmatpush1.bf16.msra.mxu0 %v442
  %460 = vmatprep.subr.bf16.mxu0 0
  %461 = vmatpush1.bf16.msra.mxu0 %v443
  %462 = vmatprep.subr.bf16.mxu0 0
  %463 = vmatpush1.bf16.msra.mxu0 %v444
  %464 = vmatprep.subr.bf16.mxu0 0
  %465 = vmatpush1.bf16.msra.mxu0 %v445
  %466 = vmatprep.subr.bf16.mxu0 0
  %467 = vmatpush1.bf16.msra.mxu0 %v446
  %468 = vmatprep.subr.bf16.mxu0 0
  %469 = vmatpush1.bf16.msra.mxu0 %v447
  %470 = vmatprep.subr.bf16.mxu0 0
  %471 = vmatpush1.bf16.msra.mxu0 %v448
  %472 = vmatprep.subr.bf16.mxu0 0
  %473 = vmatpush1.bf16.msra.mxu0 %v449
  %474 = vmatprep.subr.bf16.mxu0 0
  %475 = vmatpush1.bf16.msra.mxu0 0
  %476 = vmatprep.subr.bf16.mxu0 0
  %477 = vmatpush1.bf16.msra.mxu0 0
  %478 = vmatprep.subr.bf16.mxu0 0
  %479 = vmatpush1.bf16.msra.mxu0 0
  %480 = vmatprep.subr.bf16.mxu0 0
  %481 = vmatpush1.bf16.msra.mxu0 0
  %482 = vmatprep.subr.bf16.mxu0 0
  %483 = vmatpush1.bf16.msra.mxu0 0
  %484 = vmatprep.subr.bf16.mxu0 0
  %485 = vmatpush1.bf16.msra.mxu0 0
  %486 = vmatprep.subr.bf16.mxu0 0
  %487 = vmatpush1.bf16.msra.mxu0 0
  %488 = vmatprep.subr.bf16.mxu0 0
  %489 = vmatpush1.bf16.msra.mxu0 0
  %490 = vmatprep.mubr.bf16.mxu0 0
  %491 = vmatmul.mubr.bf16.gmra.mrb[0].mxu0 %v379
  %v492 = vpop.f32.mrb[0].mxu0
  %v493 = vadd.f32 %v408, %v492
  %v494 = vpop.f32.mrb[0].mxu0
  %v495 = vpop.f32.mrb[0].mxu0
  %v496 = vadd.f32 %v408, %v495
  %v497 = vpop.f32.mrb[0].mxu0
  %498 = vmatprep.mubr.bf16.mxu0 0
  %499 = vmatmul.mubr.bf16.gmra.mrb[0].mxu0 %v380
  %v500 = vpop.f32.mrb[0].mxu0
  %v501 = vadd.f32 %v408, %v500
  %v502 = vpop.f32.mrb[0].mxu0
  %v503 = vpop.f32.mrb[0].mxu0
  %v504 = vadd.f32 %v408, %v503
  %v505 = vpop.f32.mrb[0].mxu0
  %506 = vmatprep.mubr.bf16.mxu0 0
  %507 = vmatmul.mubr.bf16.gmra.mrb[0].mxu0 %v381
  %v508 = vpop.f32.mrb[0].mxu0
  %v509 = vadd.f32 %v408, %v508
  %v510 = vpop.f32.mrb[0].mxu0
  %v511 = vpop.f32.mrb[0].mxu0
  %v512 = vadd.f32 %v408, %v511
  %v513 = vpop.f32.mrb[0].mxu0
  %514 = vmatprep.mubr.bf16.mxu0 0
  %515 = vmatmul.mubr.bf16.gmra.mrb[0].mxu0 %v382
  %v516 = vpop.f32.mrb[0].mxu0
  %v517 = vadd.f32 %v408, %v516
  %v518 = vpop.f32.mrb[0].mxu0
  %v519 = vpop.f32.mrb[0].mxu0
  %v520 = vadd.f32 %v408, %v519
  %v521 = vpop.f32.mrb[0].mxu0
  %522 = vmatprep.mubr.bf16.mxu0 0
  %523 = vmatmul.mubr.bf16.gmra.mrb[0].mxu0 %v383
  %v524 = vpop.f32.mrb[0].mxu0
  %v525 = vadd.f32 %v408, %v524
  %v526 = vpop.f32.mrb[0].mxu0
  %v527 = vpop.f32.mrb[0].mxu0
  %v528 = vadd.f32 %v408, %v527
  %v529 = vpop.f32.mrb[0].mxu0
  %530 = vmatprep.mubr.bf16.mxu0 0
  %531 = vmatmul.mubr.bf16.gmra.mrb[0].mxu0 %v384
  %v532 = vpop.f32.mrb[0].mxu0
  %v533 = vadd.f32 %v408, %v532
  %v534 = vpop.f32.mrb[0].mxu0
  %v535 = vpop.f32.mrb[0].mxu0
  %v536 = vadd.f32 %v408, %v535
  %v537 = vpop.f32.mrb[0].mxu0
  %538 = vmatprep.mubr.bf16.mxu0 0
  %539 = vmatmul.mubr.bf16.gmra.mrb[0].mxu0 %v385
  %v540 = vpop.f32.mrb[0].mxu0
  %v541 = vadd.f32 %v408, %v540
  %v542 = vpop.f32.mrb[0].mxu0
  %v543 = vpop.f32.mrb[0].mxu0
  %v544 = vadd.f32 %v408, %v543
  %v545 = vpop.f32.mrb[0].mxu0
  %546 = vmatprep.mubr.bf16.mxu0 0
  %547 = vmatmul.mubr.bf16.gmra.mrb[0].mxu0 %v386
  %v548 = vpop.f32.mrb[0].mxu0
  %v549 = vadd.f32 %v408, %v548
  %v550 = vpop.f32.mrb[0].mxu0
  %v551 = vpop.f32.mrb[0].mxu0
  %v552 = vadd.f32 %v408, %v551
  %v553 = vpop.f32.mrb[0].mxu0
  %554 = vdwg.mxu0
  %v555 = vmax.f32 %v493, 0.0
  %v556 = vmax.f32 %v496, 0.0
  %v557 = vmax.f32 %v501, 0.0
  %v558 = vmax.f32 %v504, 0.0
  %v559 = vmax.f32 %v509, 0.0
  %v560 = vmax.f32 %v512, 0.0
  %v561 = vmax.f32 %v517, 0.0
  %v562 = vmax.f32 %v520, 0.0
  %v563 = vmax.f32 %v525, 0.0
  %v564 = vmax.f32 %v528, 0.0
  %v565 = vmax.f32 %v533, 0.0
  %v566 = vmax.f32 %v536, 0.0
  %v567 = vmax.f32 %v541, 0.0
  %v568 = vmax.f32 %v544, 0.0
  %v569 = vmax.f32 %v549, 0.0
  %v570 = vmax.f32 %v552, 0.0
  %v571 = vmul.f32 %v286, %v555
  %v572 = vmul.f32 %v291, %v556
  %v573 = vmul.f32 %v296, %v557
  %v574 = vmul.f32 %v301, %v558
  %v575 = vmul.f32 %v306, %v559
  %v576 = vmul.f32 %v311, %v560
  %v577 = vmul.f32 %v316, %v561
  %v578 = vmul.f32 %v321, %v562
  %v579 = vmul.f32 %v326, %v563
  %v580 = vmul.f32 %v331, %v564
  %v581 = vmul.f32 %v336, %v565
  %v582 = vmul.f32 %v341, %v566
  %v583 = vmul.f32 %v346, %v567
  %v584 = vmul.f32 %v351, %v568
  %v585 = vmul.f32 %v356, %v569
  %v586 = vmul.f32 %v361, %v570
  %v587 = vpack.c.bf16 %v572, %v571
  %v588 = vpack.c.bf16 %v574, %v573
  %v589 = vpack.c.bf16 %v576, %v575
  %v590 = vpack.c.bf16 %v578, %v577
  %v591 = vpack.c.bf16 %v580, %v579
  %v592 = vpack.c.bf16 %v582, %v581
  %v593 = vpack.c.bf16 %v584, %v583
  %v594 = vpack.c.bf16 %v586, %v585
  %595 = vmatprep.subr.bf16.mxu0 0
  %596 = vmatpush1.bf16.msra.mxu0 %v587
  %597 = vmatprep.subr.bf16.mxu0 0
  %598 = vmatpush1.bf16.msra.mxu0 %v588
  %599 = vmatprep.subr.bf16.mxu0 0
  %600 = vmatpush1.bf16.msra.mxu0 %v589
  %601 = vmatprep.subr.bf16.mxu0 0
  %602 = vmatpush1.bf16.msra.mxu0 %v590
  %603 = vmatprep.subr.bf16.mxu0 0
  %604 = vmatpush1.bf16.msra.mxu0 %v591
  %605 = vmatprep.subr.bf16.mxu0 0
  %606 = vmatpush1.bf16.msra.mxu0 %v592
  %607 = vmatprep.subr.bf16.mxu0 0
  %608 = vmatpush1.bf16.msra.mxu0 %v593
  %609 = vmatprep.subr.bf16.mxu0 0
  %610 = vmatpush1.bf16.msra.mxu0 %v594
  %611 = vmatprep.subr.bf16.mxu0 0
  %612 = vmatpush1.bf16.msra.mxu0 0
  %613 = vmatprep.subr.bf16.mxu0 0
  %614 = vmatpush1.bf16.msra.mxu0 0
  %615 = vmatprep.subr.bf16.mxu0 0
  %616 = vmatpush1.bf16.msra.mxu0 0
  %617 = vmatprep.subr.bf16.mxu0 0
  %618 = vmatpush1.bf16.msra.mxu0 0
  %619 = vmatprep.subr.bf16.mxu0 0
  %620 = vmatpush1.bf16.msra.mxu0 0
  %621 = vmatprep.subr.bf16.mxu0 0
  %622 = vmatpush1.bf16.msra.mxu0 0
  %623 = vmatprep.subr.bf16.mxu0 0
  %624 = vmatpush1.bf16.msra.mxu0 0
  %625 = vmatprep.subr.bf16.mxu0 0
  %626 = vmatpush1.bf16.msra.mxu0 0
  %627 = vmatprep.mubr.bf16.mxu0 0
  %628 = vmatmul.mubr.bf16.gmra.mrb[0].mxu0 %v122
  %v629 = vpop.f32.mrb[0].mxu0
  %v630 = vadd.f32 0.0, %v629
  %v631 = vpop.f32.mrb[0].mxu0
  %v632 = vpop.f32.mrb[0].mxu0
  %v633 = vadd.f32 0.0, %v632
  %v634 = vpop.f32.mrb[0].mxu0
  %635 = vmatprep.mubr.bf16.mxu0 0
  %636 = vmatmul.mubr.bf16.gmra.mrb[0].mxu0 %v123
  %v637 = vpop.f32.mrb[0].mxu0
  %v638 = vadd.f32 0.0, %v637
  %v639 = vpop.f32.mrb[0].mxu0
  %v640 = vpop.f32.mrb[0].mxu0
  %v641 = vadd.f32 0.0, %v640
  %v642 = vpop.f32.mrb[0].mxu0
  %643 = vmatprep.mubr.bf16.mxu0 0
  %644 = vmatmul.mubr.bf16.gmra.mrb[0].mxu0 %v124
  %v645 = vpop.f32.mrb[0].mxu0
  %v646 = vadd.f32 0.0, %v645
  %v647 = vpop.f32.mrb[0].mxu0
  %v648 = vpop.f32.mrb[0].mxu0
  %v649 = vadd.f32 0.0, %v648
  %v650 = vpop.f32.mrb[0].mxu0
  %651 = vmatprep.mubr.bf16.mxu0 0
  %652 = vmatmul.mubr.bf16.gmra.mrb[0].mxu0 %v125
  %v653 = vpop.f32.mrb[0].mxu0
  %v654 = vadd.f32 0.0, %v653
  %v655 = vpop.f32.mrb[0].mxu0
  %v656 = vpop.f32.mrb[0].mxu0
  %v657 = vadd.f32 0.0, %v656
  %v658 = vpop.f32.mrb[0].mxu0
  %659 = vmatprep.mubr.bf16.mxu0 0
  %660 = vmatmul.mubr.bf16.gmra.mrb[0].mxu0 %v126
  %v661 = vpop.f32.mrb[0].mxu0
  %v662 = vadd.f32 0.0, %v661
  %v663 = vpop.f32.mrb[0].mxu0
  %v664 = vpop.f32.mrb[0].mxu0
  %v665 = vadd.f32 0.0, %v664
  %v666 = vpop.f32.mrb[0].mxu0
  %667 = vmatprep.mubr.bf16.mxu0 0
  %668 = vmatmul.mubr.bf16.gmra.mrb[0].mxu0 %v127
  %v669 = vpop.f32.mrb[0].mxu0
  %v670 = vadd.f32 0.0, %v669
  %v671 = vpop.f32.mrb[0].mxu0
  %v672 = vpop.f32.mrb[0].mxu0
  %v673 = vadd.f32 0.0, %v672
  %v674 = vpop.f32.mrb[0].mxu0
  %675 = vmatprep.mubr.bf16.mxu0 0
  %676 = vmatmul.mubr.bf16.gmra.mrb[0].mxu0 %v128
  %v677 = vpop.f32.mrb[0].mxu0
  %v678 = vadd.f32 0.0, %v677
  %v679 = vpop.f32.mrb[0].mxu0
  %v680 = vpop.f32.mrb[0].mxu0
  %v681 = vadd.f32 0.0, %v680
  %v682 = vpop.f32.mrb[0].mxu0
  %683 = vmatprep.mubr.bf16.mxu0 0
  %684 = vmatmul.mubr.bf16.gmra.mrb[0].mxu0 %v129
  %v685 = vpop.f32.mrb[0].mxu0
  %v686 = vadd.f32 0.0, %v685
  %v687 = vpop.f32.mrb[0].mxu0
  %v688 = vpop.f32.mrb[0].mxu0
  %v689 = vadd.f32 0.0, %v688
  %v690 = vpop.f32.mrb[0].mxu0
  %691 = vdwg.mxu0
  %v692 = vmul.f32 %v286, %v630
  %v693 = vmul.f32 %v291, %v633
  %v694 = vmul.f32 %v296, %v638
  %v695 = vmul.f32 %v301, %v641
  %v696 = vmul.f32 %v306, %v646
  %v697 = vmul.f32 %v311, %v649
  %v698 = vmul.f32 %v316, %v654
  %v699 = vmul.f32 %v321, %v657
  %v700 = vmul.f32 %v326, %v662
  %v701 = vmul.f32 %v331, %v665
  %v702 = vmul.f32 %v336, %v670
  %v703 = vmul.f32 %v341, %v673
  %v704 = vmul.f32 %v346, %v678
  %v705 = vmul.f32 %v351, %v681
  %v706 = vmul.f32 %v356, %v686
  %v707 = vmul.f32 %v361, %v689
  %v708 = vpack.c.bf16 %v693, %v692
  %v709 = vpack.c.bf16 %v695, %v694
  %v710 = vpack.c.bf16 %v697, %v696
  %v711 = vpack.c.bf16 %v699, %v698
  %v712 = vpack.c.bf16 %v701, %v700
  %v713 = vpack.c.bf16 %v703, %v702
  %v714 = vpack.c.bf16 %v705, %v704
  %v715 = vpack.c.bf16 %v707, %v706
  %v716 = vld [vmem:[%s5] sm:$0xf]
  %v717 = vld [vmem:[%s5 + $0x4] sm:$0xf]
  %v718 = vld [vmem:[%s5 + $0x8] sm:$0xf]
  %v719 = vld [vmem:[%s5 + $0xc] sm:$0xf]
  %v720 = vld [vmem:[%s5 + $0x10] sm:$0xf]
  %v721 = vld [vmem:[%s5 + $0x14] sm:$0xf]
  %v722 = vld [vmem:[%s5 + $0x18] sm:$0xf]
  %v723 = vld [vmem:[%s5 + $0x1c] sm:$0xf]
  %v724 = vld [vmem:[%s5 + $0x20] sm:$0xf]
  %v725 = vld [vmem:[%s5 + $0x24] sm:$0xf]
  %v726 = vld [vmem:[%s5 + $0x28] sm:$0xf]
  %v727 = vld [vmem:[%s5 + $0x2c] sm:$0xf]
  %v728 = vld [vmem:[%s5 + $0x30] sm:$0xf]
  %v729 = vld [vmem:[%s5 + $0x34] sm:$0xf]
  %v730 = vld [vmem:[%s5 + $0x38] sm:$0xf]
  %v731 = vld [vmem:[%s5 + $0x3c] sm:$0xf]
  %v732 = vld [vmem:[%s6] sm:$0x1]
  %v734 = vlaneseq
  %v735 = vshrl.u32 %v734, 7
  %v736 = vsub.s32 0, %v735
  %v737 = vrot.slane %v732, %v736
  %v755 = vunpack.c.l.b16 %v716
  %v756 = vunpack.c.l.b16 %v717
  %v757 = vunpack.c.l.b16 %v718
  %v758 = vunpack.c.l.b16 %v719
  %v759 = vunpack.c.l.b16 %v720
  %v760 = vunpack.c.l.b16 %v721
  %v761 = vunpack.c.l.b16 %v722
  %v762 = vunpack.c.l.b16 %v723
  %v763 = vunpack.c.l.b16 %v724
  %v764 = vunpack.c.l.b16 %v725
  %v765 = vunpack.c.l.b16 %v726
  %v766 = vunpack.c.l.b16 %v727
  %v767 = vunpack.c.l.b16 %v728
  %v768 = vunpack.c.l.b16 %v729
  %v769 = vunpack.c.l.b16 %v730
  %v770 = vunpack.c.l.b16 %v731
  %v771 = vpack.c.b16 %v756, %v755
  %v772 = vpack.c.b16 %v758, %v757
  %v773 = vpack.c.b16 %v760, %v759
  %v774 = vpack.c.b16 %v762, %v761
  %v775 = vpack.c.b16 %v764, %v763
  %v776 = vpack.c.b16 %v766, %v765
  %v777 = vpack.c.b16 %v768, %v767
  %v778 = vpack.c.b16 %v770, %v769
  %787 = vmatprep.subr.bf16.mxu0 0
  %788 = vmatpush1.bf16.msra.mxu0 %v771
  %789 = vmatprep.subr.bf16.mxu0 0
  %790 = vmatpush1.bf16.msra.mxu0 %v772
  %791 = vmatprep.subr.bf16.mxu0 0
  %792 = vmatpush1.bf16.msra.mxu0 %v773
  %793 = vmatprep.subr.bf16.mxu0 0
  %794 = vmatpush1.bf16.msra.mxu0 %v774
  %795 = vmatprep.subr.bf16.mxu0 0
  %796 = vmatpush1.bf16.msra.mxu0 %v775
  %797 = vmatprep.subr.bf16.mxu0 0
  %798 = vmatpush1.bf16.msra.mxu0 %v776
  %799 = vmatprep.subr.bf16.mxu0 0
  %800 = vmatpush1.bf16.msra.mxu0 %v777
  %801 = vmatprep.subr.bf16.mxu0 0
  %802 = vmatpush1.bf16.msra.mxu0 %v778
  %803 = vmatprep.subr.bf16.mxu0 0
  %804 = vmatpush1.bf16.msra.mxu0 0
  %805 = vmatprep.subr.bf16.mxu0 0
  %806 = vmatpush1.bf16.msra.mxu0 0
  %807 = vmatprep.subr.bf16.mxu0 0
  %808 = vmatpush1.bf16.msra.mxu0 0
  %809 = vmatprep.subr.bf16.mxu0 0
  %810 = vmatpush1.bf16.msra.mxu0 0
  %811 = vmatprep.subr.bf16.mxu0 0
  %812 = vmatpush1.bf16.msra.mxu0 0
  %813 = vmatprep.subr.bf16.mxu0 0
  %814 = vmatpush1.bf16.msra.mxu0 0
  %815 = vmatprep.subr.bf16.mxu0 0
  %816 = vmatpush1.bf16.msra.mxu0 0
  %817 = vmatprep.subr.bf16.mxu0 0
  %818 = vmatpush1.bf16.msra.mxu0 0
  %819 = vmatprep.mubr.bf16.mxu0 0
  %820 = vmatmul.mubr.bf16.gmra.mrb[0].mxu0 %v708
  %v821 = vpop.f32.mrb[0].mxu0
  %v822 = vadd.f32 %v737, %v821
  %v823 = vpop.f32.mrb[0].mxu0
  %v824 = vpop.f32.mrb[0].mxu0
  %v825 = vadd.f32 %v737, %v824
  %v826 = vpop.f32.mrb[0].mxu0
  %827 = vmatprep.mubr.bf16.mxu0 0
  %828 = vmatmul.mubr.bf16.gmra.mrb[0].mxu0 %v709
  %v829 = vpop.f32.mrb[0].mxu0
  %v830 = vadd.f32 %v737, %v829
  %v831 = vpop.f32.mrb[0].mxu0
  %v832 = vpop.f32.mrb[0].mxu0
  %v833 = vadd.f32 %v737, %v832
  %v834 = vpop.f32.mrb[0].mxu0
  %835 = vmatprep.mubr.bf16.mxu0 0
  %836 = vmatmul.mubr.bf16.gmra.mrb[0].mxu0 %v710
  %v837 = vpop.f32.mrb[0].mxu0
  %v838 = vadd.f32 %v737, %v837
  %v839 = vpop.f32.mrb[0].mxu0
  %v840 = vpop.f32.mrb[0].mxu0
  %v841 = vadd.f32 %v737, %v840
  %v842 = vpop.f32.mrb[0].mxu0
  %843 = vmatprep.mubr.bf16.mxu0 0
  %844 = vmatmul.mubr.bf16.gmra.mrb[0].mxu0 %v711
  %v845 = vpop.f32.mrb[0].mxu0
  %v846 = vadd.f32 %v737, %v845
  %v847 = vpop.f32.mrb[0].mxu0
  %v848 = vpop.f32.mrb[0].mxu0
  %v849 = vadd.f32 %v737, %v848
  %v850 = vpop.f32.mrb[0].mxu0
  %851 = vmatprep.mubr.bf16.mxu0 0
  %852 = vmatmul.mubr.bf16.gmra.mrb[0].mxu0 %v712
  %v853 = vpop.f32.mrb[0].mxu0
  %v854 = vadd.f32 %v737, %v853
  %v855 = vpop.f32.mrb[0].mxu0
  %v856 = vpop.f32.mrb[0].mxu0
  %v857 = vadd.f32 %v737, %v856
  %v858 = vpop.f32.mrb[0].mxu0
  %859 = vmatprep.mubr.bf16.mxu0 0
  %860 = vmatmul.mubr.bf16.gmra.mrb[0].mxu0 %v713
  %v861 = vpop.f32.mrb[0].mxu0
  %v862 = vadd.f32 %v737, %v861
  %v863 = vpop.f32.mrb[0].mxu0
  %v864 = vpop.f32.mrb[0].mxu0
  %v865 = vadd.f32 %v737, %v864
  %v866 = vpop.f32.mrb[0].mxu0
  %867 = vmatprep.mubr.bf16.mxu0 0
  %868 = vmatmul.mubr.bf16.gmra.mrb[0].mxu0 %v714
  %v869 = vpop.f32.mrb[0].mxu0
  %v870 = vadd.f32 %v737, %v869
  %v871 = vpop.f32.mrb[0].mxu0
  %v872 = vpop.f32.mrb[0].mxu0
  %v873 = vadd.f32 %v737, %v872
  %v874 = vpop.f32.mrb[0].mxu0
  %875 = vmatprep.mubr.bf16.mxu0 0
  %876 = vmatmul.mubr.bf16.gmra.mrb[0].mxu0 %v715
  %v877 = vpop.f32.mrb[0].mxu0
  %v878 = vadd.f32 %v737, %v877
  %v879 = vpop.f32.mrb[0].mxu0
  %v880 = vpop.f32.mrb[0].mxu0
  %v881 = vadd.f32 %v737, %v880
  %v882 = vpop.f32.mrb[0].mxu0
  %883 = vdwg.mxu0
  %v884 = vmax.f32 %v822, 0.0
  %v885 = vmax.f32 %v825, 0.0
  %v886 = vmax.f32 %v830, 0.0
  %v887 = vmax.f32 %v833, 0.0
  %v888 = vmax.f32 %v838, 0.0
  %v889 = vmax.f32 %v841, 0.0
  %v890 = vmax.f32 %v846, 0.0
  %v891 = vmax.f32 %v849, 0.0
  %v892 = vmax.f32 %v854, 0.0
  %v893 = vmax.f32 %v857, 0.0
  %v894 = vmax.f32 %v862, 0.0
  %v895 = vmax.f32 %v865, 0.0
  %v896 = vmax.f32 %v870, 0.0
  %v897 = vmax.f32 %v873, 0.0
  %v898 = vmax.f32 %v878, 0.0
  %v899 = vmax.f32 %v881, 0.0
  %v900 = vmul.f32 %v286, %v884
  %v901 = vmul.f32 %v291, %v885
  %v902 = vmul.f32 %v296, %v886
  %v903 = vmul.f32 %v301, %v887
  %v904 = vmul.f32 %v306, %v888
  %v905 = vmul.f32 %v311, %v889
  %v906 = vmul.f32 %v316, %v890
  %v907 = vmul.f32 %v321, %v891
  %v908 = vmul.f32 %v326, %v892
  %v909 = vmul.f32 %v331, %v893
  %v910 = vmul.f32 %v336, %v894
  %v911 = vmul.f32 %v341, %v895
  %v912 = vmul.f32 %v346, %v896
  %v913 = vmul.f32 %v351, %v897
  %v914 = vmul.f32 %v356, %v898
  %v915 = vmul.f32 %v361, %v899
  %v916 = vpack.c.bf16 %v901, %v900
  %v917 = vpack.c.bf16 %v903, %v902
  %v918 = vpack.c.bf16 %v905, %v904
  %v919 = vpack.c.bf16 %v907, %v906
  %v920 = vpack.c.bf16 %v909, %v908
  %v921 = vpack.c.bf16 %v911, %v910
  %v922 = vpack.c.bf16 %v913, %v912
  %v923 = vpack.c.bf16 %v915, %v914
  %924 = vmatprep.subr.bf16.mxu0 0
  %925 = vmatpush1.bf16.msra.mxu0 %v916
  %926 = vmatprep.subr.bf16.mxu0 0
  %927 = vmatpush1.bf16.msra.mxu0 %v917
  %928 = vmatprep.subr.bf16.mxu0 0
  %929 = vmatpush1.bf16.msra.mxu0 %v918
  %930 = vmatprep.subr.bf16.mxu0 0
  %931 = vmatpush1.bf16.msra.mxu0 %v919
  %932 = vmatprep.subr.bf16.mxu0 0
  %933 = vmatpush1.bf16.msra.mxu0 %v920
  %934 = vmatprep.subr.bf16.mxu0 0
  %935 = vmatpush1.bf16.msra.mxu0 %v921
  %936 = vmatprep.subr.bf16.mxu0 0
  %937 = vmatpush1.bf16.msra.mxu0 %v922
  %938 = vmatprep.subr.bf16.mxu0 0
  %939 = vmatpush1.bf16.msra.mxu0 %v923
  %940 = vmatprep.subr.bf16.mxu0 0
  %941 = vmatpush1.bf16.msra.mxu0 0
  %942 = vmatprep.subr.bf16.mxu0 0
  %943 = vmatpush1.bf16.msra.mxu0 0
  %944 = vmatprep.subr.bf16.mxu0 0
  %945 = vmatpush1.bf16.msra.mxu0 0
  %946 = vmatprep.subr.bf16.mxu0 0
  %947 = vmatpush1.bf16.msra.mxu0 0
  %948 = vmatprep.subr.bf16.mxu0 0
  %949 = vmatpush1.bf16.msra.mxu0 0
  %950 = vmatprep.subr.bf16.mxu0 0
  %951 = vmatpush1.bf16.msra.mxu0 0
  %952 = vmatprep.subr.bf16.mxu0 0
  %953 = vmatpush1.bf16.msra.mxu0 0
  %954 = vmatprep.subr.bf16.mxu0 0
  %955 = vmatpush1.bf16.msra.mxu0 0
  %956 = vmatprep.mubr.bf16.mxu0 0
  %957 = vmatmul.mubr.bf16.gmra.mrb[0].mxu0 %v122
  %v958 = vpop.f32.mrb[0].mxu0
  %v959 = vadd.f32 0.0, %v958
  %v960 = vpop.f32.mrb[0].mxu0
  %v961 = vpop.f32.mrb[0].mxu0
  %v962 = vadd.f32 0.0, %v961
  %v963 = vpop.f32.mrb[0].mxu0
  %964 = vmatprep.mubr.bf16.mxu0 0
  %965 = vmatmul.mubr.bf16.gmra.mrb[0].mxu0 %v123
  %v966 = vpop.f32.mrb[0].mxu0
  %v967 = vadd.f32 0.0, %v966
  %v968 = vpop.f32.mrb[0].mxu0
  %v969 = vpop.f32.mrb[0].mxu0
  %v970 = vadd.f32 0.0, %v969
  %v971 = vpop.f32.mrb[0].mxu0
  %972 = vmatprep.mubr.bf16.mxu0 0
  %973 = vmatmul.mubr.bf16.gmra.mrb[0].mxu0 %v124
  %v974 = vpop.f32.mrb[0].mxu0
  %v975 = vadd.f32 0.0, %v974
  %v976 = vpop.f32.mrb[0].mxu0
  %v977 = vpop.f32.mrb[0].mxu0
  %v978 = vadd.f32 0.0, %v977
  %v979 = vpop.f32.mrb[0].mxu0
  %980 = vmatprep.mubr.bf16.mxu0 0
  %981 = vmatmul.mubr.bf16.gmra.mrb[0].mxu0 %v125
  %v982 = vpop.f32.mrb[0].mxu0
  %v983 = vadd.f32 0.0, %v982
  %v984 = vpop.f32.mrb[0].mxu0
  %v985 = vpop.f32.mrb[0].mxu0
  %v986 = vadd.f32 0.0, %v985
  %v987 = vpop.f32.mrb[0].mxu0
  %988 = vmatprep.mubr.bf16.mxu0 0
  %989 = vmatmul.mubr.bf16.gmra.mrb[0].mxu0 %v126
  %v990 = vpop.f32.mrb[0].mxu0
  %v991 = vadd.f32 0.0, %v990
  %v992 = vpop.f32.mrb[0].mxu0
  %v993 = vpop.f32.mrb[0].mxu0
  %v994 = vadd.f32 0.0, %v993
  %v995 = vpop.f32.mrb[0].mxu0
  %996 = vmatprep.mubr.bf16.mxu0 0
  %997 = vmatmul.mubr.bf16.gmra.mrb[0].mxu0 %v127
  %v998 = vpop.f32.mrb[0].mxu0
  %v999 = vadd.f32 0.0, %v998
  %v1000 = vpop.f32.mrb[0].mxu0
  %v1001 = vpop.f32.mrb[0].mxu0
  %v1002 = vadd.f32 0.0, %v1001
  %v1003 = vpop.f32.mrb[0].mxu0
  %1004 = vmatprep.mubr.bf16.mxu0 0
  %1005 = vmatmul.mubr.bf16.gmra.mrb[0].mxu0 %v128
  %v1006 = vpop.f32.mrb[0].mxu0
  %v1007 = vadd.f32 0.0, %v1006
  %v1008 = vpop.f32.mrb[0].mxu0
  %v1009 = vpop.f32.mrb[0].mxu0
  %v1010 = vadd.f32 0.0, %v1009
  %v1011 = vpop.f32.mrb[0].mxu0
  %1012 = vmatprep.mubr.bf16.mxu0 0
  %1013 = vmatmul.mubr.bf16.gmra.mrb[0].mxu0 %v129
  %v1014 = vpop.f32.mrb[0].mxu0
  %v1015 = vadd.f32 0.0, %v1014
  %v1016 = vpop.f32.mrb[0].mxu0
  %v1017 = vpop.f32.mrb[0].mxu0
  %v1018 = vadd.f32 0.0, %v1017
  %v1019 = vpop.f32.mrb[0].mxu0
  %1020 = vdwg.mxu0
  %v1021 = vmul.f32 %v286, %v959
  %v1022 = vmul.f32 %v291, %v962
  %v1023 = vmul.f32 %v296, %v967
  %v1024 = vmul.f32 %v301, %v970
  %v1025 = vmul.f32 %v306, %v975
  %v1026 = vmul.f32 %v311, %v978
  %v1027 = vmul.f32 %v316, %v983
  %v1028 = vmul.f32 %v321, %v986
  %v1029 = vmul.f32 %v326, %v991
  %v1030 = vmul.f32 %v331, %v994
  %v1031 = vmul.f32 %v336, %v999
  %v1032 = vmul.f32 %v341, %v1002
  %v1033 = vmul.f32 %v346, %v1007
  %v1034 = vmul.f32 %v351, %v1010
  %v1035 = vmul.f32 %v356, %v1015
  %v1036 = vmul.f32 %v361, %v1018
  %v1037 = vpack.c.bf16 %v1022, %v1021
  %v1038 = vpack.c.bf16 %v1024, %v1023
  %v1039 = vpack.c.bf16 %v1026, %v1025
  %v1040 = vpack.c.bf16 %v1028, %v1027
  %v1041 = vpack.c.bf16 %v1030, %v1029
  %v1042 = vpack.c.bf16 %v1032, %v1031
  %v1043 = vpack.c.bf16 %v1034, %v1033
  %v1044 = vpack.c.bf16 %v1036, %v1035
  %v1045 = vld [vmem:[%s7] sm:$0xf]
  %v1046 = vld [vmem:[%s7 + $0x4] sm:$0xf]
  %v1047 = vld [vmem:[%s7 + $0x8] sm:$0xf]
  %v1048 = vld [vmem:[%s7 + $0xc] sm:$0xf]
  %v1049 = vld [vmem:[%s7 + $0x10] sm:$0xf]
  %v1050 = vld [vmem:[%s7 + $0x14] sm:$0xf]
  %v1051 = vld [vmem:[%s7 + $0x18] sm:$0xf]
  %v1052 = vld [vmem:[%s7 + $0x1c] sm:$0xf]
  %v1053 = vld [vmem:[%s7 + $0x20] sm:$0xf]
  %v1054 = vld [vmem:[%s7 + $0x24] sm:$0xf]
  %v1055 = vld [vmem:[%s7 + $0x28] sm:$0xf]
  %v1056 = vld [vmem:[%s7 + $0x2c] sm:$0xf]
  %v1057 = vld [vmem:[%s7 + $0x30] sm:$0xf]
  %v1058 = vld [vmem:[%s7 + $0x34] sm:$0xf]
  %v1059 = vld [vmem:[%s7 + $0x38] sm:$0xf]
  %v1060 = vld [vmem:[%s7 + $0x3c] sm:$0xf]
  %v1061 = vld [vmem:[%s8] sm:$0x1]
  %v1063 = vlaneseq
  %v1064 = vshrl.u32 %v1063, 7
  %v1065 = vsub.s32 0, %v1064
  %v1066 = vrot.slane %v1061, %v1065
  %v1084 = vunpack.c.l.b16 %v1045
  %v1085 = vunpack.c.l.b16 %v1046
  %v1086 = vunpack.c.l.b16 %v1047
  %v1087 = vunpack.c.l.b16 %v1048
  %v1088 = vunpack.c.l.b16 %v1049
  %v1089 = vunpack.c.l.b16 %v1050
  %v1090 = vunpack.c.l.b16 %v1051
  %v1091 = vunpack.c.l.b16 %v1052
  %v1092 = vunpack.c.l.b16 %v1053
  %v1093 = vunpack.c.l.b16 %v1054
  %v1094 = vunpack.c.l.b16 %v1055
  %v1095 = vunpack.c.l.b16 %v1056
  %v1096 = vunpack.c.l.b16 %v1057
  %v1097 = vunpack.c.l.b16 %v1058
  %v1098 = vunpack.c.l.b16 %v1059
  %v1099 = vunpack.c.l.b16 %v1060
  %v1100 = vpack.c.b16 %v1085, %v1084
  %v1101 = vpack.c.b16 %v1087, %v1086
  %v1102 = vpack.c.b16 %v1089, %v1088
  %v1103 = vpack.c.b16 %v1091, %v1090
  %v1104 = vpack.c.b16 %v1093, %v1092
  %v1105 = vpack.c.b16 %v1095, %v1094
  %v1106 = vpack.c.b16 %v1097, %v1096
  %v1107 = vpack.c.b16 %v1099, %v1098
  %1116 = vmatprep.subr.bf16.mxu0 0
  %1117 = vmatpush1.bf16.msra.mxu0 %v1100
  %1118 = vmatprep.subr.bf16.mxu0 0
  %1119 = vmatpush1.bf16.msra.mxu0 %v1101
  %1120 = vmatprep.subr.bf16.mxu0 0
  %1121 = vmatpush1.bf16.msra.mxu0 %v1102
  %1122 = vmatprep.subr.bf16.mxu0 0
  %1123 = vmatpush1.bf16.msra.mxu0 %v1103
  %1124 = vmatprep.subr.bf16.mxu0 0
  %1125 = vmatpush1.bf16.msra.mxu0 %v1104
  %1126 = vmatprep.subr.bf16.mxu0 0
  %1127 = vmatpush1.bf16.msra.mxu0 %v1105
  %1128 = vmatprep.subr.bf16.mxu0 0
  %1129 = vmatpush1.bf16.msra.mxu0 %v1106
  %1130 = vmatprep.subr.bf16.mxu0 0
  %1131 = vmatpush1.bf16.msra.mxu0 %v1107
  %1132 = vmatprep.subr.bf16.mxu0 0
  %1133 = vmatpush1.bf16.msra.mxu0 0
  %1134 = vmatprep.subr.bf16.mxu0 0
  %1135 = vmatpush1.bf16.msra.mxu0 0
  %1136 = vmatprep.subr.bf16.mxu0 0
  %1137 = vmatpush1.bf16.msra.mxu0 0
  %1138 = vmatprep.subr.bf16.mxu0 0
  %1139 = vmatpush1.bf16.msra.mxu0 0
  %1140 = vmatprep.subr.bf16.mxu0 0
  %1141 = vmatpush1.bf16.msra.mxu0 0
  %1142 = vmatprep.subr.bf16.mxu0 0
  %1143 = vmatpush1.bf16.msra.mxu0 0
  %1144 = vmatprep.subr.bf16.mxu0 0
  %1145 = vmatpush1.bf16.msra.mxu0 0
  %1146 = vmatprep.subr.bf16.mxu0 0
  %1147 = vmatpush1.bf16.msra.mxu0 0
  %1148 = vmatprep.mubr.bf16.mxu0 0
  %1149 = vmatmul.mubr.bf16.gmra.mrb[0].mxu0 %v1037
  %v1150 = vpop.f32.mrb[0].mxu0
  %v1151 = vadd.f32 %v1066, %v1150
  %v1152 = vpop.f32.mrb[0].mxu0
  %v1153 = vpop.f32.mrb[0].mxu0
  %v1154 = vadd.f32 %v1066, %v1153
  %v1155 = vpop.f32.mrb[0].mxu0
  %1156 = vmatprep.mubr.bf16.mxu0 0
  %1157 = vmatmul.mubr.bf16.gmra.mrb[0].mxu0 %v1038
  %v1158 = vpop.f32.mrb[0].mxu0
  %v1159 = vadd.f32 %v1066, %v1158
  %v1160 = vpop.f32.mrb[0].mxu0
  %v1161 = vpop.f32.mrb[0].mxu0
  %v1162 = vadd.f32 %v1066, %v1161
  %v1163 = vpop.f32.mrb[0].mxu0
  %1164 = vmatprep.mubr.bf16.mxu0 0
  %1165 = vmatmul.mubr.bf16.gmra.mrb[0].mxu0 %v1039
  %v1166 = vpop.f32.mrb[0].mxu0
  %v1167 = vadd.f32 %v1066, %v1166
  %v1168 = vpop.f32.mrb[0].mxu0
  %v1169 = vpop.f32.mrb[0].mxu0
  %v1170 = vadd.f32 %v1066, %v1169
  %v1171 = vpop.f32.mrb[0].mxu0
  %1172 = vmatprep.mubr.bf16.mxu0 0
  %1173 = vmatmul.mubr.bf16.gmra.mrb[0].mxu0 %v1040
  %v1174 = vpop.f32.mrb[0].mxu0
  %v1175 = vadd.f32 %v1066, %v1174
  %v1176 = vpop.f32.mrb[0].mxu0
  %v1177 = vpop.f32.mrb[0].mxu0
  %v1178 = vadd.f32 %v1066, %v1177
  %v1179 = vpop.f32.mrb[0].mxu0
  %1180 = vmatprep.mubr.bf16.mxu0 0
  %1181 = vmatmul.mubr.bf16.gmra.mrb[0].mxu0 %v1041
  %v1182 = vpop.f32.mrb[0].mxu0
  %v1183 = vadd.f32 %v1066, %v1182
  %v1184 = vpop.f32.mrb[0].mxu0
  %v1185 = vpop.f32.mrb[0].mxu0
  %v1186 = vadd.f32 %v1066, %v1185
  %v1187 = vpop.f32.mrb[0].mxu0
  %1188 = vmatprep.mubr.bf16.mxu0 0
  %1189 = vmatmul.mubr.bf16.gmra.mrb[0].mxu0 %v1042
  %v1190 = vpop.f32.mrb[0].mxu0
  %v1191 = vadd.f32 %v1066, %v1190
  %v1192 = vpop.f32.mrb[0].mxu0
  %v1193 = vpop.f32.mrb[0].mxu0
  %v1194 = vadd.f32 %v1066, %v1193
  %v1195 = vpop.f32.mrb[0].mxu0
  %1196 = vmatprep.mubr.bf16.mxu0 0
  %1197 = vmatmul.mubr.bf16.gmra.mrb[0].mxu0 %v1043
  %v1198 = vpop.f32.mrb[0].mxu0
  %v1199 = vadd.f32 %v1066, %v1198
  %v1200 = vpop.f32.mrb[0].mxu0
  %v1201 = vpop.f32.mrb[0].mxu0
  %v1202 = vadd.f32 %v1066, %v1201
  %v1203 = vpop.f32.mrb[0].mxu0
  %1204 = vmatprep.mubr.bf16.mxu0 0
  %1205 = vmatmul.mubr.bf16.gmra.mrb[0].mxu0 %v1044
  %v1206 = vpop.f32.mrb[0].mxu0
  %v1207 = vadd.f32 %v1066, %v1206
  %v1208 = vpop.f32.mrb[0].mxu0
  %v1209 = vpop.f32.mrb[0].mxu0
  %v1210 = vadd.f32 %v1066, %v1209
  %v1211 = vpop.f32.mrb[0].mxu0
  %1212 = vdwg.mxu0
  %v1213 = vpack.c.bf16 %v1154, %v1151
  %v1214 = vpack.c.bf16 %v1162, %v1159
  %v1215 = vpack.c.bf16 %v1170, %v1167
  %v1216 = vpack.c.bf16 %v1178, %v1175
  %v1217 = vpack.c.bf16 %v1186, %v1183
  %v1218 = vpack.c.bf16 %v1194, %v1191
  %v1219 = vpack.c.bf16 %v1202, %v1199
  %v1220 = vpack.c.bf16 %v1210, %v1207
  %v1221 = vld [vmem:[%s9] sm:$0xf]
  %1222 = vmatprep.subr.bf16.mxu0 0
  %1223 = vmatpush1.bf16.msra.mxu0 %v1213
  %1224 = vmatprep.subr.bf16.mxu0 0
  %1225 = vmatpush1.bf16.msra.mxu0 %v1214
  %1226 = vmatprep.subr.bf16.mxu0 0
  %1227 = vmatpush1.bf16.msra.mxu0 %v1215
  %1228 = vmatprep.subr.bf16.mxu0 0
  %1229 = vmatpush1.bf16.msra.mxu0 %v1216
  %1230 = vmatprep.subr.bf16.mxu0 0
  %1231 = vmatpush1.bf16.msra.mxu0 %v1217
  %1232 = vmatprep.subr.bf16.mxu0 0
  %1233 = vmatpush1.bf16.msra.mxu0 %v1218
  %1234 = vmatprep.subr.bf16.mxu0 0
  %1235 = vmatpush1.bf16.msra.mxu0 %v1219
  %1236 = vmatprep.subr.bf16.mxu0 0
  %1237 = vmatpush1.bf16.msra.mxu0 %v1220
  %1238 = vmatprep.subr.bf16.mxu0 0
  %1239 = vmatpush1.bf16.msra.mxu0 0
  %1240 = vmatprep.subr.bf16.mxu0 0
  %1241 = vmatpush1.bf16.msra.mxu0 0
  %1242 = vmatprep.subr.bf16.mxu0 0
  %1243 = vmatpush1.bf16.msra.mxu0 0
  %1244 = vmatprep.subr.bf16.mxu0 0
  %1245 = vmatpush1.bf16.msra.mxu0 0
  %1246 = vmatprep.subr.bf16.mxu0 0
  %1247 = vmatpush1.bf16.msra.mxu0 0
  %1248 = vmatprep.subr.bf16.mxu0 0
  %1249 = vmatpush1.bf16.msra.mxu0 0
  %1250 = vmatprep.subr.bf16.mxu0 0
  %1251 = vmatpush1.bf16.msra.mxu0 0
  %1252 = vmatprep.subr.bf16.mxu0 0
  %1253 = vmatpush1.bf16.msra.mxu0 0
  %1254 = vmatprep.mubr.bf16.mxu0 0
  %1255 = vmatmul.mubr.bf16.gmra.mrb[0].mxu0 %v1221
  %v1256 = vpop.f32.mrb[0].mxu0
  %v1257 = vadd.f32 0.0, %v1256
  %v1258 = vpop.f32.mrb[0].mxu0
  %v1259 = vpop.f32.mrb[0].mxu0
  %v1260 = vpop.f32.mrb[0].mxu0
  %1261 = vdwg.mxu0
  %v1262 = vpack.c.bf16 %v1257, %v1257
  %v1263 = vld [vmem:[%s10] sm:$0xf]
  %v1264 = vld [vmem:[%s10 + $0x4] sm:$0xf]
  %v1265 = vld [vmem:[%s10 + $0x8] sm:$0xf]
  %v1266 = vld [vmem:[%s10 + $0xc] sm:$0xf]
  %v1267 = vld [vmem:[%s10 + $0x10] sm:$0xf]
  %v1268 = vld [vmem:[%s10 + $0x14] sm:$0xf]
  %v1269 = vld [vmem:[%s10 + $0x18] sm:$0xf]
  %v1270 = vld [vmem:[%s10 + $0x1c] sm:$0xf]
  %v1271 = vld [vmem:[%s10 + $0x20] sm:$0xf]
  %v1272 = vld [vmem:[%s10 + $0x24] sm:$0xf]
  %v1273 = vld [vmem:[%s10 + $0x28] sm:$0xf]
  %v1274 = vld [vmem:[%s10 + $0x2c] sm:$0xf]
  %v1275 = vld [vmem:[%s10 + $0x30] sm:$0xf]
  %v1276 = vld [vmem:[%s10 + $0x34] sm:$0xf]
  %v1277 = vld [vmem:[%s10 + $0x38] sm:$0xf]
  %v1278 = vld [vmem:[%s10 + $0x3c] sm:$0xf]
  %v1279 = vld [vmem:[%s11] sm:$0x1]
  %v1281 = vlaneseq
  %v1282 = vshrl.u32 %v1281, 7
  %v1283 = vsub.s32 0, %v1282
  %v1284 = vrot.slane %v1279, %v1283
  %v1302 = vunpack.c.l.b16 %v1263
  %v1303 = vunpack.c.l.b16 %v1264
  %v1304 = vunpack.c.l.b16 %v1265
  %v1305 = vunpack.c.l.b16 %v1266
  %v1306 = vunpack.c.l.b16 %v1267
  %v1307 = vunpack.c.l.b16 %v1268
  %v1308 = vunpack.c.l.b16 %v1269
  %v1309 = vunpack.c.l.b16 %v1270
  %v1310 = vunpack.c.l.b16 %v1271
  %v1311 = vunpack.c.l.b16 %v1272
  %v1312 = vunpack.c.l.b16 %v1273
  %v1313 = vunpack.c.l.b16 %v1274
  %v1314 = vunpack.c.l.b16 %v1275
  %v1315 = vunpack.c.l.b16 %v1276
  %v1316 = vunpack.c.l.b16 %v1277
  %v1317 = vunpack.c.l.b16 %v1278
  %v1318 = vpack.c.b16 %v1303, %v1302
  %v1319 = vpack.c.b16 %v1305, %v1304
  %v1320 = vpack.c.b16 %v1307, %v1306
  %v1321 = vpack.c.b16 %v1309, %v1308
  %v1322 = vpack.c.b16 %v1311, %v1310
  %v1323 = vpack.c.b16 %v1313, %v1312
  %v1324 = vpack.c.b16 %v1315, %v1314
  %v1325 = vpack.c.b16 %v1317, %v1316
  %1334 = vmatprep.subr.bf16.mxu0 0
  %1335 = vmatpush1.bf16.msra.mxu0 %v1318
  %1336 = vmatprep.subr.bf16.mxu0 0
  %1337 = vmatpush1.bf16.msra.mxu0 %v1319
  %1338 = vmatprep.subr.bf16.mxu0 0
  %1339 = vmatpush1.bf16.msra.mxu0 %v1320
  %1340 = vmatprep.subr.bf16.mxu0 0
  %1341 = vmatpush1.bf16.msra.mxu0 %v1321
  %1342 = vmatprep.subr.bf16.mxu0 0
  %1343 = vmatpush1.bf16.msra.mxu0 %v1322
  %1344 = vmatprep.subr.bf16.mxu0 0
  %1345 = vmatpush1.bf16.msra.mxu0 %v1323
  %1346 = vmatprep.subr.bf16.mxu0 0
  %1347 = vmatpush1.bf16.msra.mxu0 %v1324
  %1348 = vmatprep.subr.bf16.mxu0 0
  %1349 = vmatpush1.bf16.msra.mxu0 %v1325
  %1350 = vmatprep.subr.bf16.mxu0 0
  %1351 = vmatpush1.bf16.msra.mxu0 0
  %1352 = vmatprep.subr.bf16.mxu0 0
  %1353 = vmatpush1.bf16.msra.mxu0 0
  %1354 = vmatprep.subr.bf16.mxu0 0
  %1355 = vmatpush1.bf16.msra.mxu0 0
  %1356 = vmatprep.subr.bf16.mxu0 0
  %1357 = vmatpush1.bf16.msra.mxu0 0
  %1358 = vmatprep.subr.bf16.mxu0 0
  %1359 = vmatpush1.bf16.msra.mxu0 0
  %1360 = vmatprep.subr.bf16.mxu0 0
  %1361 = vmatpush1.bf16.msra.mxu0 0
  %1362 = vmatprep.subr.bf16.mxu0 0
  %1363 = vmatpush1.bf16.msra.mxu0 0
  %1364 = vmatprep.subr.bf16.mxu0 0
  %1365 = vmatpush1.bf16.msra.mxu0 0
  %1366 = vmatprep.mubr.bf16.mxu0 0
  %1367 = vmatmul.mubr.bf16.gmra.mrb[0].mxu0 %v1262
  %v1368 = vpop.f32.mrb[0].mxu0
  %v1369 = vadd.f32 %v1284, %v1368
  %v1370 = vpop.f32.mrb[0].mxu0
  %v1371 = vpop.f32.mrb[0].mxu0
  %v1372 = vpop.f32.mrb[0].mxu0
  %1373 = vdwg.mxu0
  %1374 = vst [vmem:[%s12] sm:$0xff] %v1369
  // Predicated region
  $region50: #{gcn_forward.1} parent=0 // pred_check
    _
  $region51: #{gcn_forward.1} parent=0 // pred_check_branch
    %1376 = sbr.rel (0) target = $region53
  $region52: #{gcn_forward.1} parent=0 // pred_region
    _
  $region53: #{gcn_forward.1} parent=0 // pred_fallthru
    _
  // Predicated region
  $region54: #{gcn_forward.1} parent=0 // pred_check
    _
  $region55: #{gcn_forward.1} parent=0 // pred_check_branch
    %1378 = sbr.rel (0) target = $region57
  $region56: #{gcn_forward.1} parent=0 // pred_region
    _
  $region57: #{gcn_forward.1} parent=0 // pred_fallthru
    _

</llo_original>
